<compile_context>
chip_gen: v7x
topology: tpu7x:2x2x1
jax: 0.10.0
libtpu: 0.0.40
codegen_flags: <defaults>
</compile_context>

<pallas_src>
import jax
import jax.numpy as jnp
from jax.experimental import pallas as pl
from jax.experimental.pallas import tpu as pltpu

_LANE = 128
_EPS = 1e-12
_VMEM_LIMIT_BYTES = 48 * 1024 * 1024     # < v7x 64 MiB physical; v5e/v6e have 128 MiB
_VMEM_BUDGET_FRAC = 0.75                 # headroom for compiler scratch / semaphores
_N_F32_TEMPS = 5                         # y, mean, c, var/inv, f32 out (worst case)


def _choose_row_tile(total_rows: int, width: int, itemsize: int) -> int:
    """Rows per block.

    Sized against a VMEM budget of:
        2x double-buffered (x + pe + out) blocks in the input dtype
      + ~_N_F32_TEMPS full-tile f32 temporaries from the kernel body.
    Rounded to the dtype's native sublane tiling; prefers a divisor of total_rows
    (no ragged edge) but only down to cap/2 - a single masked edge block is far
    cheaper than a degenerate small tile.
    """
    per_row = width * (6 * itemsize + 4 * _N_F32_TEMPS)
    budget = int(_VMEM_LIMIT_BYTES * _VMEM_BUDGET_FRAC)
    sub = max(8, 32 // max(itemsize, 1))        # (8,128) f32, (16,128) bf16, (32,128) int8
    cap = min(total_rows, max(sub, budget // max(per_row, 1)))
    if cap >= total_rows:
        return total_rows                        # full-extent block is always legal
    cap = max(sub, (cap // sub) * sub)
    lo = max(sub, ((cap // 2) // sub) * sub)
    for t in range(cap, lo - 1, -sub):
        if total_rows % t == 0:
            return t
    return cap                                   # ragged edge: Pallas masks OOB stores


def _learned_pe_folded_kernel(x_ref, pe_ref, s_ref, gamma_ref, beta_ref, o_ref):
    # x_ref:    (1, TL, 128)  folded block (128/D original rows packed into the lane dim)
    # pe_ref:   (TL, 128)     folded positional-embedding rows for this seq-tile
    # s_ref:    (128, 128)    block-diagonal averaging matrix (1/D within each D-lane group)
    # gamma/beta: (1, 128)    layernorm affine (f32), tiled 128/D times along lanes
    #
    # NOTE: all math is row-local (the block-diagonal matmul never mixes folded rows), so
    # padded garbage rows in a ragged edge block cannot contaminate valid rows; the masked
    # store simply drops them.
    x = x_ref[0].astype(jnp.float32)
    pe = pe_ref[...].astype(jnp.float32)
    y = x + pe

    s = s_ref[...]
    # Segmented (per original d_model row) mean/var via MXU matmul; result is already
    # broadcast across each D-lane group. HIGHEST precision => full-f32 accuracy.
    mean = jnp.dot(y, s, preferred_element_type=jnp.float32,
                   precision=jax.lax.Precision.HIGHEST)
    c = y - mean
    var = jnp.dot(c * c, s, preferred_element_type=jnp.float32,
                  precision=jax.lax.Precision.HIGHEST)
    inv = jax.lax.rsqrt(var + _EPS)
    out = (c * inv) * gamma_ref[...] + beta_ref[...]
    o_ref[0] = out.astype(o_ref.dtype)


def _learned_pe_direct_kernel(x_ref, pe_ref, gamma_ref, beta_ref, o_ref):
    # Used when d_model is already lane-dense (>=128) or cannot be folded.
    # Row-local as well (mean/var over the last axis only).
    x = x_ref[0].astype(jnp.float32)
    pe = pe_ref[...].astype(jnp.float32)
    y = x + pe
    mean = jnp.mean(y, axis=-1, keepdims=True)
    c = y - mean
    var = jnp.mean(c * c, axis=-1, keepdims=True)
    inv = jax.lax.rsqrt(var + _EPS)
    out = c * inv * gamma_ref[...] + beta_ref[...]
    o_ref[0] = out.astype(o_ref.dtype)


def learned_pe_forward(x, pos_embedding, gamma, beta, *, row_tile=None):
    """x: (N, L, D); pos_embedding: (max_seq_len, D); gamma/beta: (D,)."""
    N, L, D = x.shape
    if L > pos_embedding.shape[0]:
        raise ValueError(f"seq_len {L} exceeds max_seq_len {pos_embedding.shape[0]}")
    pe = pos_embedding[:L].astype(x.dtype)                    # (L, D) plain-JAX slice + cast

    # seq-tile axis "parallel" (v7x dual-TC sharding over the large axis), batch axis
    # "arbitrary" (kept sequential so the pe block re-DMA is skipped across batch steps).
    compiler_params = pltpu.CompilerParams(
        dimension_semantics=("parallel", "arbitrary"),
        vmem_limit_bytes=_VMEM_LIMIT_BYTES,
    )

    foldable = (D < _LANE) and (_LANE % D == 0) and (L % (_LANE // D) == 0)
    if foldable:
        # Fold F = 128/D consecutive sequence rows into the lane dimension -> unmasked vst.
        F = _LANE // D
        Lf = L // F
        Df = _LANE
        x_f = x.reshape(N, Lf, Df)
        pe_f = pe.reshape(Lf, Df)
        gamma_f = jnp.tile(gamma.astype(jnp.float32), F).reshape(1, Df)
        beta_f = jnp.tile(beta.astype(jnp.float32), F).reshape(1, Df)
        group = jnp.arange(Df, dtype=jnp.int32) // D
        s = (group[:, None] == group[None, :]).astype(jnp.float32) / D   # (128,128)

        TL = row_tile if row_tile is not None else _choose_row_tile(Lf, Df, x.dtype.itemsize)
        # seq-tiles leading, batch innermost: pe block index is constant across consecutive
        # (batch) steps, so Pallas fetches each pe tile from HBM exactly once.
        grid = (pl.cdiv(Lf, TL), N)
        out = pl.pallas_call(
            _learned_pe_folded_kernel,
            out_shape=jax.ShapeDtypeStruct((N, Lf, Df), x.dtype),
            grid_spec=pltpu.PrefetchScalarGridSpec(
                num_scalar_prefetch=0,
                grid=grid,
                in_specs=[
                    pl.BlockSpec((1, TL, Df), lambda j, i: (i, j, 0)),   # x tile
                    pl.BlockSpec((TL, Df), lambda j, i: (j, 0)),         # pe tile (batch-invariant)
                    pl.BlockSpec((Df, Df), lambda j, i: (0, 0)),         # segment-avg matrix
                    pl.BlockSpec((1, Df), lambda j, i: (0, 0)),          # gamma
                    pl.BlockSpec((1, Df), lambda j, i: (0, 0)),          # beta
                ],
                out_specs=pl.BlockSpec((1, TL, Df), lambda j, i: (i, j, 0)),
            ),
            compiler_params=compiler_params,
        )(x_f, pe_f, s, gamma_f, beta_f)
        return out.reshape(N, L, D)

    # Direct (already lane-dense / non-foldable) path: tile over (seq, batch).
    gamma2 = gamma.astype(jnp.float32).reshape(1, D)
    beta2 = beta.astype(jnp.float32).reshape(1, D)
    TL = row_tile if row_tile is not None else _choose_row_tile(L, D, x.dtype.itemsize)
    grid = (pl.cdiv(L, TL), N)
    return pl.pallas_call(
        _learned_pe_direct_kernel,
        out_shape=jax.ShapeDtypeStruct((N, L, D), x.dtype),
        grid_spec=pltpu.PrefetchScalarGridSpec(
            num_scalar_prefetch=0,
            grid=grid,
            in_specs=[
                pl.BlockSpec((1, TL, D), lambda j, i: (i, j, 0)),        # x tile
                pl.BlockSpec((TL, D), lambda j, i: (j, 0)),              # pe tile (batch-invariant)
                pl.BlockSpec((1, D), lambda j, i: (0, 0)),               # gamma
                pl.BlockSpec((1, D), lambda j, i: (0, 0)),               # beta
            ],
            out_specs=pl.BlockSpec((1, TL, D), lambda j, i: (i, j, 0)),
        ),
        compiler_params=compiler_params,
    )(x, pe, gamma2, beta2)


def reference_forward(x, pos_embedding, gamma, beta):
    """Pure-JAX reference of the PyTorch forward (eval mode)."""
    L = x.shape[1]
    pe = pos_embedding[:L][None, :, :]
    y = x.astype(jnp.float32) + pe.astype(jnp.float32)
    mean = jnp.mean(y, axis=-1, keepdims=True)
    var = jnp.mean((y - mean) ** 2, axis=-1, keepdims=True)
    normed = (y - mean) / jnp.sqrt(var + _EPS)
    return normed * gamma + beta


if __name__ == "__main__":
    key = jax.random.PRNGKey(0)
    k_emb, k_g, k_b, k_x1, k_x2, k_emb2, k_x3, k_x4 = jax.random.split(key, 8)

    # --- Case 1: small NLC input, d_model < 128 (lane-folded path) ---
    d_model, max_seq_len = 32, 128
    batch, seq_len = 2, 8
    pos_embedding = jax.random.normal(k_emb, (max_seq_len, d_model), dtype=jnp.float32)
    gamma = 1.0 + 0.1 * jax.random.normal(k_g, (d_model,), dtype=jnp.float32)
    beta = 0.1 * jax.random.normal(k_b, (d_model,), dtype=jnp.float32)

    x = jax.random.normal(k_x1, (batch, seq_len, d_model), dtype=jnp.float32)
    out = jax.block_until_ready(learned_pe_forward(x, pos_embedding, gamma, beta))
    ref = reference_forward(x, pos_embedding, gamma, beta)
    assert out.shape == x.shape
    assert jnp.allclose(out, ref, atol=1e-4, rtol=1e-4), "folded path mismatch"

    # --- Case 2: full max_seq_len with forced seq-tiling (multi-tile grid, pe reuse) ---
    x2 = jax.random.normal(k_x2, (batch, max_seq_len, d_model), dtype=jnp.float32)
    out2 = jax.block_until_ready(
        learned_pe_forward(x2, pos_embedding, gamma, beta, row_tile=8))
    ref2 = reference_forward(x2, pos_embedding, gamma, beta)
    assert jnp.allclose(out2, ref2, atol=1e-4, rtol=1e-4), "tiled folded path mismatch"

    # --- Case 3: d_model = 128 (already lane-dense, direct path) ---
    d_model3, seq3 = 128, 16
    pos_embedding3 = jax.random.normal(k_emb2, (max_seq_len, d_model3), dtype=jnp.float32)
    gamma3 = jnp.ones((d_model3,), dtype=jnp.float32)
    beta3 = jnp.zeros((d_model3,), dtype=jnp.float32)
    x3 = jax.random.normal(k_x3, (batch, seq3, d_model3), dtype=jnp.float32)
    out3 = jax.block_until_ready(learned_pe_forward(x3, pos_embedding3, gamma3, beta3))
    ref3 = reference_forward(x3, pos_embedding3, gamma3, beta3)
    assert jnp.allclose(out3, ref3, atol=1e-4, rtol=1e-4), "direct path mismatch"

    # --- Case 4: bf16 input, d_model < 128 (dtype-aware tiling, bf16 pe DMA) ---
    x4 = jax.random.normal(k_x4, (batch, seq_len, d_model), dtype=jnp.float32).astype(jnp.bfloat16)
    out4 = jax.block_until_ready(learned_pe_forward(x4, pos_embedding, gamma, beta))
    ref4 = reference_forward(x4, pos_embedding, gamma, beta)
    assert out4.dtype == jnp.bfloat16
    assert jnp.allclose(out4.astype(jnp.float32), ref4, atol=5e-2, rtol=5e-2), "bf16 path mismatch"

    print("KERNEL_OK")
</pallas_src>

<mosaic_0001>
module attributes {stable_mosaic.version = 11 : i64} {
  func.func @_learned_pe_folded_kernel(%arg0: i32, %arg1: i32, %arg2: memref<1x2x128xf32, #tpu.memory_space<vmem>>, %arg3: memref<2x128xf32, #tpu.memory_space<vmem>>, %arg4: memref<128x128xf32, #tpu.memory_space<vmem>>, %arg5: memref<1x128xf32, #tpu.memory_space<vmem>>, %arg6: memref<1x128xf32, #tpu.memory_space<vmem>>, %arg7: memref<1x2x128xf32, #tpu.memory_space<vmem>>) attributes {dimension_semantics = [#tpu.dimension_semantics<parallel>, #tpu.dimension_semantics<arbitrary>], iteration_bounds = array<i64: 1, 2>, scalar_prefetch = 0 : i64, scratch_operands = 0 : i64, tpu.core_type = #tpu.core_type<tc>, window_params = [{transform_indices = @transform_0, window_bounds = array<i64: 1, 2, 128>}, {transform_indices = @transform_1, window_bounds = array<i64: 2, 128>}, {pipeline_mode = #tpu.pipeline_mode<synchronous>, transform_indices = @transform_2, window_bounds = array<i64: 128, 128>}, {pipeline_mode = #tpu.pipeline_mode<synchronous>, transform_indices = @transform_3, window_bounds = array<i64: 1, 128>}, {pipeline_mode = #tpu.pipeline_mode<synchronous>, transform_indices = @transform_4, window_bounds = array<i64: 1, 128>}, {transform_indices = @transform_5, window_bounds = array<i64: 1, 2, 128>}]} {
    %c0 = arith.constant 0 : index
    %c0_0 = arith.constant 0 : index
    %c0_1 = arith.constant 0 : index
    %0 = vector.load %arg2[%c0, %c0_0, %c0_1] : memref<1x2x128xf32, #tpu.memory_space<vmem>>, vector<1x2x128xf32>
    %1 = vector.shape_cast %0 : vector<1x2x128xf32> to vector<2x128xf32>
    %c0_2 = arith.constant 0 : index
    %c0_3 = arith.constant 0 : index
    %2 = vector.load %arg3[%c0_2, %c0_3] : memref<2x128xf32, #tpu.memory_space<vmem>>, vector<2x128xf32>
    %3 = arith.addf %1, %2 : vector<2x128xf32>
    %c0_4 = arith.constant 0 : index
    %c0_5 = arith.constant 0 : index
    %4 = vector.load %arg4[%c0_4, %c0_5] : memref<128x128xf32, #tpu.memory_space<vmem>>, vector<128x128xf32>
    %cst = arith.constant dense<0.000000e+00> : vector<2x128xf32>
    %5 = tpu.matmul %3, %4, %cst {dimension_numbers = #tpu.dot_dimension_numbers<[1], [0], [0], [1], [0, 0, 1, 1], [], []>, precision = #tpu.contract_precision<fp32>} : vector<2x128xf32>, vector<128x128xf32>, vector<2x128xf32> -> vector<2x128xf32>
    %6 = arith.subf %3, %5 : vector<2x128xf32>
    %7 = arith.mulf %6, %6 : vector<2x128xf32>
    %cst_6 = arith.constant dense<0.000000e+00> : vector<2x128xf32>
    %8 = tpu.matmul %7, %4, %cst_6 {dimension_numbers = #tpu.dot_dimension_numbers<[1], [0], [0], [1], [0, 0, 1, 1], [], []>, precision = #tpu.contract_precision<fp32>} : vector<2x128xf32>, vector<128x128xf32>, vector<2x128xf32> -> vector<2x128xf32>
    %cst_7 = arith.constant 9.99999996E-13 : f32
    %9 = vector.broadcast %cst_7 : f32 to vector<2x128xf32>
    %10 = arith.addf %8, %9 : vector<2x128xf32>
    %11 = math.rsqrt %10 : vector<2x128xf32>
    %12 = arith.mulf %6, %11 : vector<2x128xf32>
    %c0_8 = arith.constant 0 : index
    %c0_9 = arith.constant 0 : index
    %13 = vector.load %arg5[%c0_8, %c0_9] : memref<1x128xf32, #tpu.memory_space<vmem>>, vector<1x128xf32>
    %14 = vector.broadcast %13 : vector<1x128xf32> to vector<2x128xf32>
    %15 = arith.mulf %12, %14 : vector<2x128xf32>
    %c0_10 = arith.constant 0 : index
    %c0_11 = arith.constant 0 : index
    %16 = vector.load %arg6[%c0_10, %c0_11] : memref<1x128xf32, #tpu.memory_space<vmem>>, vector<1x128xf32>
    %17 = vector.broadcast %16 : vector<1x128xf32> to vector<2x128xf32>
    %18 = arith.addf %15, %17 : vector<2x128xf32>
    %c0_12 = arith.constant 0 : index
    %c0_13 = arith.constant 0 : index
    %c0_14 = arith.constant 0 : index
    %19 = vector.load %arg7[%c0_12, %c0_13, %c0_14] : memref<1x2x128xf32, #tpu.memory_space<vmem>>, vector<1x2x128xf32>
    %20 = vector.shape_cast %19 : vector<1x2x128xf32> to vector<2x128xf32>
    %21 = vector.shape_cast %18 : vector<2x128xf32> to vector<1x2x128xf32>
    tpu.vector_store %arg7[%c0_12, %c0_13, %c0_14], %21 {strides = array<i32>} : memref<1x2x128xf32, #tpu.memory_space<vmem>>, vector<1x2x128xf32>,
    return
  }
  func.func @transform_0(%arg0: i32, %arg1: i32) -> (i32, i32, i32) {
    %c0_i32 = arith.constant 0 : i32
    %c0_i32_0 = arith.constant 0 : i32
    return %arg1, %arg0, %c0_i32 : i32, i32, i32
  }
  func.func @transform_1(%arg0: i32, %arg1: i32) -> (i32, i32) {
    %c0_i32 = arith.constant 0 : i32
    %c0_i32_0 = arith.constant 0 : i32
    return %arg0, %c0_i32 : i32, i32
  }
  func.func @transform_2(%arg0: i32, %arg1: i32) -> (i32, i32) {
    %c0_i32 = arith.constant 0 : i32
    %c0_i32_0 = arith.constant 0 : i32
    %c0_i32_1 = arith.constant 0 : i32
    return %c0_i32, %c0_i32_0 : i32, i32
  }
  func.func @transform_3(%arg0: i32, %arg1: i32) -> (i32, i32) {
    %c0_i32 = arith.constant 0 : i32
    %c0_i32_0 = arith.constant 0 : i32
    %c0_i32_1 = arith.constant 0 : i32
    return %c0_i32, %c0_i32_0 : i32, i32
  }
  func.func @transform_4(%arg0: i32, %arg1: i32) -> (i32, i32) {
    %c0_i32 = arith.constant 0 : i32
    %c0_i32_0 = arith.constant 0 : i32
    %c0_i32_1 = arith.constant 0 : i32
    return %c0_i32, %c0_i32_0 : i32, i32
  }
  func.func @transform_5(%arg0: i32, %arg1: i32) -> (i32, i32, i32) {
    %c0_i32 = arith.constant 0 : i32
    %c0_i32_0 = arith.constant 0 : i32
    return %arg1, %arg0, %c0_i32 : i32, i32, i32
  }
}

</mosaic_0001>

<llo_original>
// kernel: tpu_custom_call.1
$region0: #{tpu_custom_call.1}
  #allocation0 [shape = 'u32[]', space=smem, size = 0x4, offset = 0x4, fixed_abs, tag = 'smem constant byte address 0x4 - core index']
  #allocation1 [shape = 'u32[144,128]{1,0:T(1,128)}', space=vmem, size = 0x12000, scoped, tag = 'internal scratch']
  %s0 = inlined_call_operand.hbm [shape: f32[2,2,128], index: 0, kind: input, shape index: {}]
  %s1 = inlined_call_operand.vmem [shape: f32[2,128], index: 1, kind: input, shape index: {}]
  %s2 = inlined_call_operand.hbm [shape: f32[128,128], index: 2, kind: input, shape index: {}]
  %s3 = inlined_call_operand.vmem [shape: f32[1,128], index: 3, kind: input, shape index: {}]
  %s4 = inlined_call_operand.vmem [shape: f32[1,128], index: 4, kind: input, shape index: {}]
  %s5 = inlined_call_operand.hbm [shape: f32[2,2,128], index: 5, kind: output, shape index: {}]
  %s6 = sld [smem:[#allocation0]]
  $region61: #{tpu_custom_call.1} parent=0
    _
  %s8 = ssub.s32 1, %s6
  %s9 = scalar_select 0, %s8, %s6
  $region1: #{tpu_custom_call.1} parent=0
    #allocation2 [shape = 'u8[2048]{0}', space=vmem, size = 0x800, scoped, tag = 'input window, operand 0']
    #allocation3 [shape = 's32[2]{0}', space=sflag, size = 0x8, scoped, tag = 'scoped memory for tpu_custom_call.1']
    #allocation4 [shape = 's32[2]{0}', space=sflag, size = 0x8, scoped, tag = 'scoped memory for tpu_custom_call.1']
    #allocation5 [shape = 'u8[65536]{0}', space=vmem, size = 0x10000, scoped, tag = 'input window, operand 2, single buffered']
    #allocation6 [shape = 's32[1]{0}', space=sflag, size = 0x4, scoped, tag = 'scoped memory for tpu_custom_call.1']
    #allocation7 [shape = 'u8[2048]{0}', space=vmem, size = 0x800, scoped, tag = 'output window, operand 0']
    %10 = vsyncpa [#allocation3], 0
    %s11 = scalar_lea.sflag [#allocation3], 1
    %12 = vsyncpa %s11, 0
    %13 = vsyncpa [#allocation6], 0
    %14 = vsyncpa [#allocation4], 0
    %s15 = scalar_lea.sflag [#allocation4], 1
    %16 = vsyncpa %s15, 0
    loop: start=0, step=1, limit=4
    $region2: #{tpu_custom_call.1} parent=1 // loop_pre_header
      _
    $region3: #{tpu_custom_call.1} parent=1 // loop_header
      %s18 = sphi 0, %s22
      %p19 = scmp.ge.s32.totalorder %s18, 4
      %s25 = sphi 0, %s37
      %s26 = sphi 0, %s33
      %s27 = sphi 0, %s25
      %s28 = sphi 0, %s26
      %s29 = sphi 0, %s27
      %s30 = sphi 0, %s28
      %s42 = sphi 0, %s44
      %s45 = sphi 0, %s42
      %s46 = sphi 0, %s45
      %s62 = sphi 0, %s46
      %s68 = sphi 0, %s70
      %s71 = sphi 0, %s68
      %s72 = sphi 0, %s71
      %s88 = sphi 0, %s72
      %s92 = sphi 0, %s92
      %s94 = sphi 0, %s92
      %s95 = sphi 0, %s94
      %s109 = sphi 0, %s95
      %s113 = sphi 0, %s113
      %s115 = sphi 0, %s113
      %s116 = sphi 0, %s115
      %s130 = sphi 0, %s116
      %s134 = sphi 0, %s134
      %s136 = sphi 0, %s134
      %s137 = sphi 0, %s136
      %s151 = sphi 0, %s137
      %s159 = sphi 0, %s161
      %s162 = sphi 0, %s159
      %s163 = sphi 0, %s162
      %s179 = sphi 0, %s163
    $region4: #{tpu_custom_call.1} parent=1 // loop_header_branch
      %21 = sbr.rel (%p19) target = $region8
    $region5: #{tpu_custom_call.1} parent=1 // loop_body
      %s23 = ssub.s32 %s18, 1
      %s24 = ssub.s32 %s18, 2
      %s31 = sadd.s32 1, %s26
      %p32 = scmp.ge.s32.totalorder %s31, 2
      %s33 = scalar_select %p32, 0, %s31
      %s34 = sadd.s32 1, %s25
      %s35 = scalar_select %p32, %s34, %s25
      %p36 = scmp.ge.s32.totalorder %s35, 1
      %s37 = scalar_select %p36, 0, %s35
      %s38 = ssub.s32 %s26, %s33
      %s39 = ssub.s32 %s25, %s37
      %s40 = sor.u32 %s38, %s39
      %p41 = scmp.eq.s32.totalorder %s40, 0
      %s43 = sadd.s32 %s42, 1
      %s44 = scalar_select %p41, %s42, %s43
      %p47 = pneg %p41
      %p48 = scmp.eq.s32.totalorder %s18, 1
      %p49 = por %p47, %p48
      %p50 = scmp.ne.s32.totalorder %s42, %s45
      %p51 = scmp.eq.s32.totalorder %s18, 0
      %p52 = por %p50, %p51
      %p53 = scmp.ne.s32.totalorder %s42, %s45
      %p54 = scmp.eq.s32.totalorder %s23, 1
      %p55 = por %p53, %p54
      %p56 = scmp.ne.s32.totalorder %s45, %s46
      %p57 = scmp.eq.s32.totalorder %s23, 0
      %p58 = por %p56, %p57
      %p59 = scmp.ne.s32.totalorder %s45, %s46
      %p60 = scmp.eq.s32.totalorder %s24, 1
      %p61 = por %p59, %p60
      %p63 = scmp.ne.s32.totalorder %s46, %s62
      %p64 = scmp.eq.s32.totalorder %s24, 0
      %p65 = por %p63, %p64
      %s66 = ssub.s32 %s25, %s37
      %p67 = scmp.eq.s32.totalorder %s66, 0
      %s69 = sadd.s32 %s68, 1
      %s70 = scalar_select %p67, %s68, %s69
      %p73 = pneg %p67
      %p74 = scmp.eq.s32.totalorder %s18, 1
      %p75 = por %p73, %p74
      %p76 = scmp.ne.s32.totalorder %s68, %s71
      %p77 = scmp.eq.s32.totalorder %s18, 0
      %p78 = por %p76, %p77
      %p79 = scmp.ne.s32.totalorder %s68, %s71
      %p80 = scmp.eq.s32.totalorder %s23, 1
      %p81 = por %p79, %p80
      %p82 = scmp.ne.s32.totalorder %s71, %s72
      %p83 = scmp.eq.s32.totalorder %s23, 0
      %p84 = por %p82, %p83
      %p85 = scmp.ne.s32.totalorder %s71, %s72
      %p86 = scmp.eq.s32.totalorder %s24, 1
      %p87 = por %p85, %p86
      %p89 = scmp.ne.s32.totalorder %s72, %s88
      %p90 = scmp.eq.s32.totalorder %s24, 0
      %p91 = por %p89, %p90
      %s93 = sadd.s32 %s92, 1
      %p96 = scmp.eq.s32.totalorder %s18, 1
      %p97 = scmp.ne.s32.totalorder %s92, %s94
      %p98 = scmp.eq.s32.totalorder %s18, 0
      %p99 = por %p97, %p98
      %p100 = scmp.ne.s32.totalorder %s92, %s94
      %p101 = scmp.eq.s32.totalorder %s23, 1
      %p102 = por %p100, %p101
      %p103 = scmp.ne.s32.totalorder %s94, %s95
      %p104 = scmp.eq.s32.totalorder %s23, 0
      %p105 = por %p103, %p104
      %p106 = scmp.ne.s32.totalorder %s94, %s95
      %p107 = scmp.eq.s32.totalorder %s24, 1
      %p108 = por %p106, %p107
      %p110 = scmp.ne.s32.totalorder %s95, %s109
      %p111 = scmp.eq.s32.totalorder %s24, 0
      %p112 = por %p110, %p111
      %s114 = sadd.s32 %s113, 1
      %p117 = scmp.eq.s32.totalorder %s18, 1
      %p118 = scmp.ne.s32.totalorder %s113, %s115
      %p119 = scmp.eq.s32.totalorder %s18, 0
      %p120 = por %p118, %p119
      %p121 = scmp.ne.s32.totalorder %s113, %s115
      %p122 = scmp.eq.s32.totalorder %s23, 1
      %p123 = por %p121, %p122
      %p124 = scmp.ne.s32.totalorder %s115, %s116
      %p125 = scmp.eq.s32.totalorder %s23, 0
      %p126 = por %p124, %p125
      %p127 = scmp.ne.s32.totalorder %s115, %s116
      %p128 = scmp.eq.s32.totalorder %s24, 1
      %p129 = por %p127, %p128
      %p131 = scmp.ne.s32.totalorder %s116, %s130
      %p132 = scmp.eq.s32.totalorder %s24, 0
      %p133 = por %p131, %p132
      %s135 = sadd.s32 %s134, 1
      %p138 = scmp.eq.s32.totalorder %s18, 1
      %p139 = scmp.ne.s32.totalorder %s134, %s136
      %p140 = scmp.eq.s32.totalorder %s18, 0
      %p141 = por %p139, %p140
      %p142 = scmp.ne.s32.totalorder %s134, %s136
      %p143 = scmp.eq.s32.totalorder %s23, 1
      %p144 = por %p142, %p143
      %p145 = scmp.ne.s32.totalorder %s136, %s137
      %p146 = scmp.eq.s32.totalorder %s23, 0
      %p147 = por %p145, %p146
      %p148 = scmp.ne.s32.totalorder %s136, %s137
      %p149 = scmp.eq.s32.totalorder %s24, 1
      %p150 = por %p148, %p149
      %p152 = scmp.ne.s32.totalorder %s137, %s151
      %p153 = scmp.eq.s32.totalorder %s24, 0
      %p154 = por %p152, %p153
      %s155 = ssub.s32 %s26, %s33
      %s156 = ssub.s32 %s25, %s37
      %s157 = sor.u32 %s155, %s156
      %p158 = scmp.eq.s32.totalorder %s157, 0
      %s160 = sadd.s32 %s159, 1
      %s161 = scalar_select %p158, %s159, %s160
      %p164 = pneg %p158
      %p165 = scmp.eq.s32.totalorder %s18, 1
      %p166 = por %p164, %p165
      %p167 = scmp.ne.s32.totalorder %s159, %s162
      %p168 = scmp.eq.s32.totalorder %s18, 0
      %p169 = por %p167, %p168
      %p170 = scmp.ne.s32.totalorder %s159, %s162
      %p171 = scmp.eq.s32.totalorder %s23, 1
      %p172 = por %p170, %p171
      %p173 = scmp.ne.s32.totalorder %s162, %s163
      %p174 = scmp.eq.s32.totalorder %s23, 0
      %p175 = por %p173, %p174
      %p176 = scmp.ne.s32.totalorder %s162, %s163
      %p177 = scmp.eq.s32.totalorder %s24, 1
      %p178 = por %p176, %p177
      %p180 = scmp.ne.s32.totalorder %s163, %s179
      %p181 = scmp.eq.s32.totalorder %s24, 0
      %p182 = por %p180, %p181
      %p183 = scmp.le.s32.totalorder 1, %s18
      %p184 = scmp.lt.s32.totalorder %s18, 3
      %p185 = pnand %p183, %p184
      %p186 = pneg %p185
      // Predicated region
      $region9: #{tpu_custom_call.1} parent=5 // pred_check
        _
      $region10: #{tpu_custom_call.1} parent=5 // pred_check_branch
        %188 = sbr.rel (%p185) target = $region12
      $region11: #{tpu_custom_call.1} parent=5 // pred_region
        %s189 = ssub.s32 %s18, 1
        // Predicated region
        $region13: #{tpu_custom_call.1} parent=11 // pred_check
          %p190 = pneg %p84
        $region14: #{tpu_custom_call.1} parent=11 // pred_check_branch
          %192 = sbr.rel (%p190) target = $region16
        $region15: #{tpu_custom_call.1} parent=11 // pred_region
          %p193 = scmp.lt.s32.totalorder %s27, 0
          %s194 = scalar_select %p193, %s27, 0
          %s195 = smul.addr %s194, 2
          %s196 = scalar_lea.vmem %s1, %s195
        $region16: #{tpu_custom_call.1} parent=11 // pred_fallthru
          _
        // Predicated region
        $region17: #{tpu_custom_call.1} parent=11 // pred_check
          %p197 = pneg %p105
        $region18: #{tpu_custom_call.1} parent=11 // pred_check_branch
          %199 = sbr.rel (%p197) target = $region20
        $region19: #{tpu_custom_call.1} parent=11 // pred_region
          %s201 = ssub.s32 2048, 2048
          %202 = vsyncadd [#allocation6], %s201
          %s203 = sshll.u32 [#allocation5], 4
          %s204 = int_to_ptr.vmem [resolvable:$true] %s203
          %209 = dma.hbm_to_vmem [thread:$0]  %s2, 2048, %s204, [#allocation6], 128, 128, 8
        $region20: #{tpu_custom_call.1} parent=11 // pred_fallthru
          _
        // Predicated region
        $region21: #{tpu_custom_call.1} parent=11 // pred_check
          %p210 = pneg %p126
        $region22: #{tpu_custom_call.1} parent=11 // pred_check_branch
          %212 = sbr.rel (%p210) target = $region24
        $region23: #{tpu_custom_call.1} parent=11 // pred_region
          _
        $region24: #{tpu_custom_call.1} parent=11 // pred_fallthru
          _
        // Predicated region
        $region25: #{tpu_custom_call.1} parent=11 // pred_check
          %p213 = pneg %p147
        $region26: #{tpu_custom_call.1} parent=11 // pred_check_branch
          %215 = sbr.rel (%p213) target = $region28
        $region27: #{tpu_custom_call.1} parent=11 // pred_region
          _
        $region28: #{tpu_custom_call.1} parent=11 // pred_fallthru
          _
      $region12: #{tpu_custom_call.1} parent=5 // pred_fallthru
        _
      %p216 = scmp.lt.s32.totalorder %s18, 2
      // Predicated region
      $region29: #{tpu_custom_call.1} parent=5 // pred_check
        %p217 = pneg %p216
      $region30: #{tpu_custom_call.1} parent=5 // pred_check_branch
        %219 = sbr.rel (%p217) target = $region32
      $region31: #{tpu_custom_call.1} parent=5 // pred_region
        // Predicated region
        $region33: #{tpu_custom_call.1} parent=31 // pred_check
          %p220 = pneg %p52
        $region34: #{tpu_custom_call.1} parent=31 // pred_check_branch
          %222 = sbr.rel (%p220) target = $region36
        $region35: #{tpu_custom_call.1} parent=31 // pred_region
          %s223 = sand.u32 %s42, 1
          %s224 = scalar_lea.sflag [#allocation3], %s223
          %s225 = sand.u32 %s42, 1
          %s226 = smul.addr %s225, 2
          %s227 = scalar_lea.vmem [#allocation2], %s226
          %s229 = ssub.s32 32, 32
          %230 = vsyncadd %s224, %s229
          %s231 = sadd.s32 %s25, %s26
          %s232 = smul.addr %s231, 32
          %s233 = scalar_lea.hbm %s0, %s232
          %s235 = sshll.u32 %s227, 4
          %s236 = int_to_ptr.vmem [resolvable:$true] %s235
          %238 = dma.hbm_to_vmem [thread:$0]  %s233, 32, %s236, %s224
        $region36: #{tpu_custom_call.1} parent=31 // pred_fallthru
          _
      $region32: #{tpu_custom_call.1} parent=5 // pred_fallthru
        _
      %p239 = scmp.le.s32.totalorder 1, %s18
      %p240 = scmp.lt.s32.totalorder %s18, 3
      %p241 = pnand %p239, %p240
      %p242 = pneg %p241
      // Predicated region
      $region37: #{tpu_custom_call.1} parent=5 // pred_check
        _
      $region38: #{tpu_custom_call.1} parent=5 // pred_check_branch
        %244 = sbr.rel (%p241) target = $region40
      $region39: #{tpu_custom_call.1} parent=5 // pred_region
        %s245 = ssub.s32 %s18, 1
        %s246 = sand.u32 %s45, 1
        %s247 = scalar_lea.sflag [#allocation3], %s246
        %s248 = sand.u32 %s45, 1
        %s249 = smul.addr %s248, 2
        %s250 = scalar_lea.vmem [#allocation2], %s249
        // Predicated region
        $region41: #{tpu_custom_call.1} parent=39 // pred_check
          %p251 = pneg %p58
        $region42: #{tpu_custom_call.1} parent=39 // pred_check_branch
          %253 = sbr.rel (%p251) target = $region44
        $region43: #{tpu_custom_call.1} parent=39 // pred_region
          %254 = dma.done %s247, 32
        $region44: #{tpu_custom_call.1} parent=39 // pred_fallthru
          _
        // Predicated region
        $region45: #{tpu_custom_call.1} parent=39 // pred_check
          %p255 = pneg %p105
        $region46: #{tpu_custom_call.1} parent=39 // pred_check_branch
          %257 = sbr.rel (%p255) target = $region48
        $region47: #{tpu_custom_call.1} parent=39 // pred_region
          %258 = dma.done [#allocation6], 2048
        $region48: #{tpu_custom_call.1} parent=39 // pred_fallthru
          _
        %s259 = sand.u32 %s45, 1
        %s260 = scalar_lea.sflag [#allocation3], %s259
        %s261 = sand.u32 %s45, 1
        %s262 = smul.addr %s261, 2
        %s263 = scalar_lea.vmem [#allocation2], %s262
        %p264 = pneg %p58
        %p265 = pneg %p55
        %p266 = scmp.lt.s32.totalorder %s27, 0
        %s267 = scalar_select %p266, %s27, 0
        %s268 = smul.addr %s267, 2
        %s269 = scalar_lea.vmem %s1, %s268
        %p270 = pneg %p84
        %p271 = pneg %p81
        %p272 = pneg %p105
        %p273 = pneg %p102
        %p274 = pneg %p126
        %p275 = pneg %p123
        %p276 = pneg %p147
        %p277 = pneg %p144
        %p278 = pneg %p175
        %p279 = pneg %p172
        %s280 = sand.u32 %s162, 1
        %s281 = scalar_lea.sflag [#allocation4], %s280
        %s282 = sand.u32 %s162, 1
        %s283 = smul.addr %s282, 2
        %s284 = scalar_lea.vmem [#allocation7], %s283
        %p285 = scmp.lt.s32.totalorder %s27, 0
        %s286 = scalar_select %p285, %s27, 0
        %s287 = smul.addr %s286, 2
        %s288 = scalar_lea.vmem %s1, %s287
        %v289 = vld [vmem:[%s250] sm:$0x3]
        %v290 = vld [vmem:[%s288] sm:$0x3]
        %v291 = vadd.f32 %v289, %v290
        %v292 = vld [vmem:[#allocation5] sm:$0xff]
        %v293 = vld [vmem:[#allocation5 + $0x8] sm:$0xff]
        %v294 = vld [vmem:[#allocation5 + $0x10] sm:$0xff]
        %v295 = vld [vmem:[#allocation5 + $0x18] sm:$0xff]
        %v296 = vld [vmem:[#allocation5 + $0x20] sm:$0xff]
        %v297 = vld [vmem:[#allocation5 + $0x28] sm:$0xff]
        %v298 = vld [vmem:[#allocation5 + $0x30] sm:$0xff]
        %v299 = vld [vmem:[#allocation5 + $0x38] sm:$0xff]
        %v300 = vld [vmem:[#allocation5 + $0x40] sm:$0xff]
        %v301 = vld [vmem:[#allocation5 + $0x48] sm:$0xff]
        %v302 = vld [vmem:[#allocation5 + $0x50] sm:$0xff]
        %v303 = vld [vmem:[#allocation5 + $0x58] sm:$0xff]
        %v304 = vld [vmem:[#allocation5 + $0x60] sm:$0xff]
        %v305 = vld [vmem:[#allocation5 + $0x68] sm:$0xff]
        %v306 = vld [vmem:[#allocation5 + $0x70] sm:$0xff]
        %v307 = vld [vmem:[#allocation5 + $0x78] sm:$0xff]
        %308 = vmatprep.subr.mxu0 0.0
        %v309 = vand.u32 %v292, 4294901760
        %310 = vmatpush1.msra.mxu0 %v309
        %311 = vmatprep.subr.mxu0 0.0
        %v312 = vand.u32 %v293, 4294901760
        %313 = vmatpush1.msra.mxu0 %v312
        %314 = vmatprep.subr.mxu0 0.0
        %v315 = vand.u32 %v294, 4294901760
        %316 = vmatpush1.msra.mxu0 %v315
        %317 = vmatprep.subr.mxu0 0.0
        %v318 = vand.u32 %v295, 4294901760
        %319 = vmatpush1.msra.mxu0 %v318
        %320 = vmatprep.subr.mxu0 0.0
        %v321 = vand.u32 %v296, 4294901760
        %322 = vmatpush1.msra.mxu0 %v321
        %323 = vmatprep.subr.mxu0 0.0
        %v324 = vand.u32 %v297, 4294901760
        %325 = vmatpush1.msra.mxu0 %v324
        %326 = vmatprep.subr.mxu0 0.0
        %v327 = vand.u32 %v298, 4294901760
        %328 = vmatpush1.msra.mxu0 %v327
        %329 = vmatprep.subr.mxu0 0.0
        %v330 = vand.u32 %v299, 4294901760
        %331 = vmatpush1.msra.mxu0 %v330
        %332 = vmatprep.subr.mxu0 0.0
        %v333 = vand.u32 %v300, 4294901760
        %334 = vmatpush1.msra.mxu0 %v333
        %335 = vmatprep.subr.mxu0 0.0
        %v336 = vand.u32 %v301, 4294901760
        %337 = vmatpush1.msra.mxu0 %v336
        %338 = vmatprep.subr.mxu0 0.0
        %v339 = vand.u32 %v302, 4294901760
        %340 = vmatpush1.msra.mxu0 %v339
        %341 = vmatprep.subr.mxu0 0.0
        %v342 = vand.u32 %v303, 4294901760
        %343 = vmatpush1.msra.mxu0 %v342
        %344 = vmatprep.subr.mxu0 0.0
        %v345 = vand.u32 %v304, 4294901760
        %346 = vmatpush1.msra.mxu0 %v345
        %347 = vmatprep.subr.mxu0 0.0
        %v348 = vand.u32 %v305, 4294901760
        %349 = vmatpush1.msra.mxu0 %v348
        %350 = vmatprep.subr.mxu0 0.0
        %v351 = vand.u32 %v306, 4294901760
        %352 = vmatpush1.msra.mxu0 %v351
        %353 = vmatprep.subr.mxu0 0.0
        %v354 = vand.u32 %v307, 4294901760
        %355 = vmatpush1.msra.mxu0 %v354
        %356 = vmatprep.subr.mxu0 0.0
        %357 = vmatpush1.msra.mxu0 0.0
        %358 = vmatprep.subr.mxu0 0.0
        %359 = vmatpush1.msra.mxu0 0.0
        %360 = vmatprep.subr.mxu0 0.0
        %361 = vmatpush1.msra.mxu0 0.0
        %362 = vmatprep.subr.mxu0 0.0
        %363 = vmatpush1.msra.mxu0 0.0
        %364 = vmatprep.subr.mxu0 0.0
        %365 = vmatpush1.msra.mxu0 0.0
        %366 = vmatprep.subr.mxu0 0.0
        %367 = vmatpush1.msra.mxu0 0.0
        %368 = vmatprep.subr.mxu0 0.0
        %369 = vmatpush1.msra.mxu0 0.0
        %370 = vmatprep.subr.mxu0 0.0
        %371 = vmatpush1.msra.mxu0 0.0
        %372 = vmatprep.subr.mxu0 0.0
        %373 = vmatpush1.msra.mxu0 0.0
        %374 = vmatprep.subr.mxu0 0.0
        %375 = vmatpush1.msra.mxu0 0.0
        %376 = vmatprep.subr.mxu0 0.0
        %377 = vmatpush1.msra.mxu0 0.0
        %378 = vmatprep.subr.mxu0 0.0
        %379 = vmatpush1.msra.mxu0 0.0
        %380 = vmatprep.subr.mxu0 0.0
        %381 = vmatpush1.msra.mxu0 0.0
        %382 = vmatprep.subr.mxu0 0.0
        %383 = vmatpush1.msra.mxu0 0.0
        %384 = vmatprep.subr.mxu0 0.0
        %385 = vmatpush1.msra.mxu0 0.0
        %386 = vmatprep.subr.mxu0 0.0
        %387 = vmatpush1.msra.mxu0 0.0
        %388 = vmatprep.mubr.f32.mxu0 0.0
        %v389 = vand.u32 %v291, 4294901760
        %v390 = vsub.f32 %v291, %v389
        %v391 = vand.u32 %v390, 4294901760
        %v392 = vsub.f32 %v390, %v391
        %v393 = vand.u32 %v392, 4294901760
        %394 = vmatmul.mubr.f32.gmra.mrb[0].mxu0 %v393
        %v395 = vpop.f32.mrb[0].mxu0
        %v396 = vadd.f32 0.0, %v395
        %v397 = vpop.f32.mrb[0].mxu0
        %398 = vdwg.mxu0
        %399 = vmatprep.subr.mxu0 0.0
        %v400 = vand.u32 %v292, 4294901760
        %v401 = vsub.f32 %v292, %v400
        %v402 = vand.u32 %v401, 4294901760
        %v403 = vsub.f32 %v401, %v402
        %v404 = vand.u32 %v403, 4294901760
        %405 = vmatpush1.msra.mxu0 %v404
        %406 = vmatprep.subr.mxu0 0.0
        %v407 = vand.u32 %v293, 4294901760
        %v408 = vsub.f32 %v293, %v407
        %v409 = vand.u32 %v408, 4294901760
        %v410 = vsub.f32 %v408, %v409
        %v411 = vand.u32 %v410, 4294901760
        %412 = vmatpush1.msra.mxu0 %v411
        %413 = vmatprep.subr.mxu0 0.0
        %v414 = vand.u32 %v294, 4294901760
        %v415 = vsub.f32 %v294, %v414
        %v416 = vand.u32 %v415, 4294901760
        %v417 = vsub.f32 %v415, %v416
        %v418 = vand.u32 %v417, 4294901760
        %419 = vmatpush1.msra.mxu0 %v418
        %420 = vmatprep.subr.mxu0 0.0
        %v421 = vand.u32 %v295, 4294901760
        %v422 = vsub.f32 %v295, %v421
        %v423 = vand.u32 %v422, 4294901760
        %v424 = vsub.f32 %v422, %v423
        %v425 = vand.u32 %v424, 4294901760
        %426 = vmatpush1.msra.mxu0 %v425
        %427 = vmatprep.subr.mxu0 0.0
        %v428 = vand.u32 %v296, 4294901760
        %v429 = vsub.f32 %v296, %v428
        %v430 = vand.u32 %v429, 4294901760
        %v431 = vsub.f32 %v429, %v430
        %v432 = vand.u32 %v431, 4294901760
        %433 = vmatpush1.msra.mxu0 %v432
        %434 = vmatprep.subr.mxu0 0.0
        %v435 = vand.u32 %v297, 4294901760
        %v436 = vsub.f32 %v297, %v435
        %v437 = vand.u32 %v436, 4294901760
        %v438 = vsub.f32 %v436, %v437
        %v439 = vand.u32 %v438, 4294901760
        %440 = vmatpush1.msra.mxu0 %v439
        %441 = vmatprep.subr.mxu0 0.0
        %v442 = vand.u32 %v298, 4294901760
        %v443 = vsub.f32 %v298, %v442
        %v444 = vand.u32 %v443, 4294901760
        %v445 = vsub.f32 %v443, %v444
        %v446 = vand.u32 %v445, 4294901760
        %447 = vmatpush1.msra.mxu0 %v446
        %448 = vmatprep.subr.mxu0 0.0
        %v449 = vand.u32 %v299, 4294901760
        %v450 = vsub.f32 %v299, %v449
        %v451 = vand.u32 %v450, 4294901760
        %v452 = vsub.f32 %v450, %v451
        %v453 = vand.u32 %v452, 4294901760
        %454 = vmatpush1.msra.mxu0 %v453
        %455 = vmatprep.subr.mxu0 0.0
        %v456 = vand.u32 %v300, 4294901760
        %v457 = vsub.f32 %v300, %v456
        %v458 = vand.u32 %v457, 4294901760
        %v459 = vsub.f32 %v457, %v458
        %v460 = vand.u32 %v459, 4294901760
        %461 = vmatpush1.msra.mxu0 %v460
        %462 = vmatprep.subr.mxu0 0.0
        %v463 = vand.u32 %v301, 4294901760
        %v464 = vsub.f32 %v301, %v463
        %v465 = vand.u32 %v464, 4294901760
        %v466 = vsub.f32 %v464, %v465
        %v467 = vand.u32 %v466, 4294901760
        %468 = vmatpush1.msra.mxu0 %v467
        %469 = vmatprep.subr.mxu0 0.0
        %v470 = vand.u32 %v302, 4294901760
        %v471 = vsub.f32 %v302, %v470
        %v472 = vand.u32 %v471, 4294901760
        %v473 = vsub.f32 %v471, %v472
        %v474 = vand.u32 %v473, 4294901760
        %475 = vmatpush1.msra.mxu0 %v474
        %476 = vmatprep.subr.mxu0 0.0
        %v477 = vand.u32 %v303, 4294901760
        %v478 = vsub.f32 %v303, %v477
        %v479 = vand.u32 %v478, 4294901760
        %v480 = vsub.f32 %v478, %v479
        %v481 = vand.u32 %v480, 4294901760
        %482 = vmatpush1.msra.mxu0 %v481
        %483 = vmatprep.subr.mxu0 0.0
        %v484 = vand.u32 %v304, 4294901760
        %v485 = vsub.f32 %v304, %v484
        %v486 = vand.u32 %v485, 4294901760
        %v487 = vsub.f32 %v485, %v486
        %v488 = vand.u32 %v487, 4294901760
        %489 = vmatpush1.msra.mxu0 %v488
        %490 = vmatprep.subr.mxu0 0.0
        %v491 = vand.u32 %v305, 4294901760
        %v492 = vsub.f32 %v305, %v491
        %v493 = vand.u32 %v492, 4294901760
        %v494 = vsub.f32 %v492, %v493
        %v495 = vand.u32 %v494, 4294901760
        %496 = vmatpush1.msra.mxu0 %v495
        %497 = vmatprep.subr.mxu0 0.0
        %v498 = vand.u32 %v306, 4294901760
        %v499 = vsub.f32 %v306, %v498
        %v500 = vand.u32 %v499, 4294901760
        %v501 = vsub.f32 %v499, %v500
        %v502 = vand.u32 %v501, 4294901760
        %503 = vmatpush1.msra.mxu0 %v502
        %504 = vmatprep.subr.mxu0 0.0
        %v505 = vand.u32 %v307, 4294901760
        %v506 = vsub.f32 %v307, %v505
        %v507 = vand.u32 %v506, 4294901760
        %v508 = vsub.f32 %v506, %v507
        %v509 = vand.u32 %v508, 4294901760
        %510 = vmatpush1.msra.mxu0 %v509
        %511 = vmatprep.subr.mxu0 0.0
        %512 = vmatpush1.msra.mxu0 0.0
        %513 = vmatprep.subr.mxu0 0.0
        %514 = vmatpush1.msra.mxu0 0.0
        %515 = vmatprep.subr.mxu0 0.0
        %516 = vmatpush1.msra.mxu0 0.0
        %517 = vmatprep.subr.mxu0 0.0
        %518 = vmatpush1.msra.mxu0 0.0
        %519 = vmatprep.subr.mxu0 0.0
        %520 = vmatpush1.msra.mxu0 0.0
        %521 = vmatprep.subr.mxu0 0.0
        %522 = vmatpush1.msra.mxu0 0.0
        %523 = vmatprep.subr.mxu0 0.0
        %524 = vmatpush1.msra.mxu0 0.0
        %525 = vmatprep.subr.mxu0 0.0
        %526 = vmatpush1.msra.mxu0 0.0
        %527 = vmatprep.subr.mxu0 0.0
        %528 = vmatpush1.msra.mxu0 0.0
        %529 = vmatprep.subr.mxu0 0.0
        %530 = vmatpush1.msra.mxu0 0.0
        %531 = vmatprep.subr.mxu0 0.0
        %532 = vmatpush1.msra.mxu0 0.0
        %533 = vmatprep.subr.mxu0 0.0
        %534 = vmatpush1.msra.mxu0 0.0
        %535 = vmatprep.subr.mxu0 0.0
        %536 = vmatpush1.msra.mxu0 0.0
        %537 = vmatprep.subr.mxu0 0.0
        %538 = vmatpush1.msra.mxu0 0.0
        %539 = vmatprep.subr.mxu0 0.0
        %540 = vmatpush1.msra.mxu0 0.0
        %541 = vmatprep.subr.mxu0 0.0
        %542 = vmatpush1.msra.mxu0 0.0
        %543 = vmatprep.mubr.f32.mxu0 0.0
        %v544 = vand.u32 %v291, 4294901760
        %545 = vmatmul.mubr.f32.gmra.mrb[0].mxu0 %v544
        %v546 = vpop.f32.mrb[0].mxu0
        %v547 = vadd.f32 %v396, %v546
        %v548 = vpop.f32.mrb[0].mxu0
        %549 = vdwg.mxu0
        %550 = vmatprep.subr.mxu0 0.0
        %v551 = vand.u32 %v292, 4294901760
        %v552 = vsub.f32 %v292, %v551
        %553 = vmatpush1.msra.mxu0 %v552
        %554 = vmatprep.subr.mxu0 0.0
        %v555 = vand.u32 %v293, 4294901760
        %v556 = vsub.f32 %v293, %v555
        %557 = vmatpush1.msra.mxu0 %v556
        %558 = vmatprep.subr.mxu0 0.0
        %v559 = vand.u32 %v294, 4294901760
        %v560 = vsub.f32 %v294, %v559
        %561 = vmatpush1.msra.mxu0 %v560
        %562 = vmatprep.subr.mxu0 0.0
        %v563 = vand.u32 %v295, 4294901760
        %v564 = vsub.f32 %v295, %v563
        %565 = vmatpush1.msra.mxu0 %v564
        %566 = vmatprep.subr.mxu0 0.0
        %v567 = vand.u32 %v296, 4294901760
        %v568 = vsub.f32 %v296, %v567
        %569 = vmatpush1.msra.mxu0 %v568
        %570 = vmatprep.subr.mxu0 0.0
        %v571 = vand.u32 %v297, 4294901760
        %v572 = vsub.f32 %v297, %v571
        %573 = vmatpush1.msra.mxu0 %v572
        %574 = vmatprep.subr.mxu0 0.0
        %v575 = vand.u32 %v298, 4294901760
        %v576 = vsub.f32 %v298, %v575
        %577 = vmatpush1.msra.mxu0 %v576
        %578 = vmatprep.subr.mxu0 0.0
        %v579 = vand.u32 %v299, 4294901760
        %v580 = vsub.f32 %v299, %v579
        %581 = vmatpush1.msra.mxu0 %v580
        %582 = vmatprep.subr.mxu0 0.0
        %v583 = vand.u32 %v300, 4294901760
        %v584 = vsub.f32 %v300, %v583
        %585 = vmatpush1.msra.mxu0 %v584
        %586 = vmatprep.subr.mxu0 0.0
        %v587 = vand.u32 %v301, 4294901760
        %v588 = vsub.f32 %v301, %v587
        %589 = vmatpush1.msra.mxu0 %v588
        %590 = vmatprep.subr.mxu0 0.0
        %v591 = vand.u32 %v302, 4294901760
        %v592 = vsub.f32 %v302, %v591
        %593 = vmatpush1.msra.mxu0 %v592
        %594 = vmatprep.subr.mxu0 0.0
        %v595 = vand.u32 %v303, 4294901760
        %v596 = vsub.f32 %v303, %v595
        %597 = vmatpush1.msra.mxu0 %v596
        %598 = vmatprep.subr.mxu0 0.0
        %v599 = vand.u32 %v304, 4294901760
        %v600 = vsub.f32 %v304, %v599
        %601 = vmatpush1.msra.mxu0 %v600
        %602 = vmatprep.subr.mxu0 0.0
        %v603 = vand.u32 %v305, 4294901760
        %v604 = vsub.f32 %v305, %v603
        %605 = vmatpush1.msra.mxu0 %v604
        %606 = vmatprep.subr.mxu0 0.0
        %v607 = vand.u32 %v306, 4294901760
        %v608 = vsub.f32 %v306, %v607
        %609 = vmatpush1.msra.mxu0 %v608
        %610 = vmatprep.subr.mxu0 0.0
        %v611 = vand.u32 %v307, 4294901760
        %v612 = vsub.f32 %v307, %v611
        %613 = vmatpush1.msra.mxu0 %v612
        %614 = vmatprep.subr.mxu0 0.0
        %615 = vmatpush1.msra.mxu0 0.0
        %616 = vmatprep.subr.mxu0 0.0
        %617 = vmatpush1.msra.mxu0 0.0
        %618 = vmatprep.subr.mxu0 0.0
        %619 = vmatpush1.msra.mxu0 0.0
        %620 = vmatprep.subr.mxu0 0.0
        %621 = vmatpush1.msra.mxu0 0.0
        %622 = vmatprep.subr.mxu0 0.0
        %623 = vmatpush1.msra.mxu0 0.0
        %624 = vmatprep.subr.mxu0 0.0
        %625 = vmatpush1.msra.mxu0 0.0
        %626 = vmatprep.subr.mxu0 0.0
        %627 = vmatpush1.msra.mxu0 0.0
        %628 = vmatprep.subr.mxu0 0.0
        %629 = vmatpush1.msra.mxu0 0.0
        %630 = vmatprep.subr.mxu0 0.0
        %631 = vmatpush1.msra.mxu0 0.0
        %632 = vmatprep.subr.mxu0 0.0
        %633 = vmatpush1.msra.mxu0 0.0
        %634 = vmatprep.subr.mxu0 0.0
        %635 = vmatpush1.msra.mxu0 0.0
        %636 = vmatprep.subr.mxu0 0.0
        %637 = vmatpush1.msra.mxu0 0.0
        %638 = vmatprep.subr.mxu0 0.0
        %639 = vmatpush1.msra.mxu0 0.0
        %640 = vmatprep.subr.mxu0 0.0
        %641 = vmatpush1.msra.mxu0 0.0
        %642 = vmatprep.subr.mxu0 0.0
        %643 = vmatpush1.msra.mxu0 0.0
        %644 = vmatprep.subr.mxu0 0.0
        %645 = vmatpush1.msra.mxu0 0.0
        %646 = vmatprep.mubr.f32.mxu0 0.0
        %v647 = vand.u32 %v291, 4294901760
        %v648 = vsub.f32 %v291, %v647
        %649 = vmatmul.mubr.f32.gmra.mrb[0].mxu0 %v648
        %v650 = vpop.f32.mrb[0].mxu0
        %v651 = vadd.f32 %v547, %v650
        %v652 = vpop.f32.mrb[0].mxu0
        %653 = vdwg.mxu0
        %654 = vmatprep.subr.mxu0 0.0
        %v655 = vand.u32 %v292, 4294901760
        %656 = vmatpush1.msra.mxu0 %v655
        %657 = vmatprep.subr.mxu0 0.0
        %v658 = vand.u32 %v293, 4294901760
        %659 = vmatpush1.msra.mxu0 %v658
        %660 = vmatprep.subr.mxu0 0.0
        %v661 = vand.u32 %v294, 4294901760
        %662 = vmatpush1.msra.mxu0 %v661
        %663 = vmatprep.subr.mxu0 0.0
        %v664 = vand.u32 %v295, 4294901760
        %665 = vmatpush1.msra.mxu0 %v664
        %666 = vmatprep.subr.mxu0 0.0
        %v667 = vand.u32 %v296, 4294901760
        %668 = vmatpush1.msra.mxu0 %v667
        %669 = vmatprep.subr.mxu0 0.0
        %v670 = vand.u32 %v297, 4294901760
        %671 = vmatpush1.msra.mxu0 %v670
        %672 = vmatprep.subr.mxu0 0.0
        %v673 = vand.u32 %v298, 4294901760
        %674 = vmatpush1.msra.mxu0 %v673
        %675 = vmatprep.subr.mxu0 0.0
        %v676 = vand.u32 %v299, 4294901760
        %677 = vmatpush1.msra.mxu0 %v676
        %678 = vmatprep.subr.mxu0 0.0
        %v679 = vand.u32 %v300, 4294901760
        %680 = vmatpush1.msra.mxu0 %v679
        %681 = vmatprep.subr.mxu0 0.0
        %v682 = vand.u32 %v301, 4294901760
        %683 = vmatpush1.msra.mxu0 %v682
        %684 = vmatprep.subr.mxu0 0.0
        %v685 = vand.u32 %v302, 4294901760
        %686 = vmatpush1.msra.mxu0 %v685
        %687 = vmatprep.subr.mxu0 0.0
        %v688 = vand.u32 %v303, 4294901760
        %689 = vmatpush1.msra.mxu0 %v688
        %690 = vmatprep.subr.mxu0 0.0
        %v691 = vand.u32 %v304, 4294901760
        %692 = vmatpush1.msra.mxu0 %v691
        %693 = vmatprep.subr.mxu0 0.0
        %v694 = vand.u32 %v305, 4294901760
        %695 = vmatpush1.msra.mxu0 %v694
        %696 = vmatprep.subr.mxu0 0.0
        %v697 = vand.u32 %v306, 4294901760
        %698 = vmatpush1.msra.mxu0 %v697
        %699 = vmatprep.subr.mxu0 0.0
        %v700 = vand.u32 %v307, 4294901760
        %701 = vmatpush1.msra.mxu0 %v700
        %702 = vmatprep.subr.mxu0 0.0
        %703 = vmatpush1.msra.mxu0 0.0
        %704 = vmatprep.subr.mxu0 0.0
        %705 = vmatpush1.msra.mxu0 0.0
        %706 = vmatprep.subr.mxu0 0.0
        %707 = vmatpush1.msra.mxu0 0.0
        %708 = vmatprep.subr.mxu0 0.0
        %709 = vmatpush1.msra.mxu0 0.0
        %710 = vmatprep.subr.mxu0 0.0
        %711 = vmatpush1.msra.mxu0 0.0
        %712 = vmatprep.subr.mxu0 0.0
        %713 = vmatpush1.msra.mxu0 0.0
        %714 = vmatprep.subr.mxu0 0.0
        %715 = vmatpush1.msra.mxu0 0.0
        %716 = vmatprep.subr.mxu0 0.0
        %717 = vmatpush1.msra.mxu0 0.0
        %718 = vmatprep.subr.mxu0 0.0
        %719 = vmatpush1.msra.mxu0 0.0
        %720 = vmatprep.subr.mxu0 0.0
        %721 = vmatpush1.msra.mxu0 0.0
        %722 = vmatprep.subr.mxu0 0.0
        %723 = vmatpush1.msra.mxu0 0.0
        %724 = vmatprep.subr.mxu0 0.0
        %725 = vmatpush1.msra.mxu0 0.0
        %726 = vmatprep.subr.mxu0 0.0
        %727 = vmatpush1.msra.mxu0 0.0
        %728 = vmatprep.subr.mxu0 0.0
        %729 = vmatpush1.msra.mxu0 0.0
        %730 = vmatprep.subr.mxu0 0.0
        %731 = vmatpush1.msra.mxu0 0.0
        %732 = vmatprep.subr.mxu0 0.0
        %733 = vmatpush1.msra.mxu0 0.0
        %734 = vmatprep.mubr.f32.mxu0 0.0
        %v735 = vand.u32 %v291, 4294901760
        %v736 = vsub.f32 %v291, %v735
        %v737 = vand.u32 %v736, 4294901760
        %738 = vmatmul.mubr.f32.gmra.mrb[0].mxu0 %v737
        %v739 = vpop.f32.mrb[0].mxu0
        %v740 = vadd.f32 %v651, %v739
        %v741 = vpop.f32.mrb[0].mxu0
        %742 = vdwg.mxu0
        %743 = vmatprep.subr.mxu0 0.0
        %v744 = vand.u32 %v292, 4294901760
        %v745 = vsub.f32 %v292, %v744
        %v746 = vand.u32 %v745, 4294901760
        %747 = vmatpush1.msra.mxu0 %v746
        %748 = vmatprep.subr.mxu0 0.0
        %v749 = vand.u32 %v293, 4294901760
        %v750 = vsub.f32 %v293, %v749
        %v751 = vand.u32 %v750, 4294901760
        %752 = vmatpush1.msra.mxu0 %v751
        %753 = vmatprep.subr.mxu0 0.0
        %v754 = vand.u32 %v294, 4294901760
        %v755 = vsub.f32 %v294, %v754
        %v756 = vand.u32 %v755, 4294901760
        %757 = vmatpush1.msra.mxu0 %v756
        %758 = vmatprep.subr.mxu0 0.0
        %v759 = vand.u32 %v295, 4294901760
        %v760 = vsub.f32 %v295, %v759
        %v761 = vand.u32 %v760, 4294901760
        %762 = vmatpush1.msra.mxu0 %v761
        %763 = vmatprep.subr.mxu0 0.0
        %v764 = vand.u32 %v296, 4294901760
        %v765 = vsub.f32 %v296, %v764
        %v766 = vand.u32 %v765, 4294901760
        %767 = vmatpush1.msra.mxu0 %v766
        %768 = vmatprep.subr.mxu0 0.0
        %v769 = vand.u32 %v297, 4294901760
        %v770 = vsub.f32 %v297, %v769
        %v771 = vand.u32 %v770, 4294901760
        %772 = vmatpush1.msra.mxu0 %v771
        %773 = vmatprep.subr.mxu0 0.0
        %v774 = vand.u32 %v298, 4294901760
        %v775 = vsub.f32 %v298, %v774
        %v776 = vand.u32 %v775, 4294901760
        %777 = vmatpush1.msra.mxu0 %v776
        %778 = vmatprep.subr.mxu0 0.0
        %v779 = vand.u32 %v299, 4294901760
        %v780 = vsub.f32 %v299, %v779
        %v781 = vand.u32 %v780, 4294901760
        %782 = vmatpush1.msra.mxu0 %v781
        %783 = vmatprep.subr.mxu0 0.0
        %v784 = vand.u32 %v300, 4294901760
        %v785 = vsub.f32 %v300, %v784
        %v786 = vand.u32 %v785, 4294901760
        %787 = vmatpush1.msra.mxu0 %v786
        %788 = vmatprep.subr.mxu0 0.0
        %v789 = vand.u32 %v301, 4294901760
        %v790 = vsub.f32 %v301, %v789
        %v791 = vand.u32 %v790, 4294901760
        %792 = vmatpush1.msra.mxu0 %v791
        %793 = vmatprep.subr.mxu0 0.0
        %v794 = vand.u32 %v302, 4294901760
        %v795 = vsub.f32 %v302, %v794
        %v796 = vand.u32 %v795, 4294901760
        %797 = vmatpush1.msra.mxu0 %v796
        %798 = vmatprep.subr.mxu0 0.0
        %v799 = vand.u32 %v303, 4294901760
        %v800 = vsub.f32 %v303, %v799
        %v801 = vand.u32 %v800, 4294901760
        %802 = vmatpush1.msra.mxu0 %v801
        %803 = vmatprep.subr.mxu0 0.0
        %v804 = vand.u32 %v304, 4294901760
        %v805 = vsub.f32 %v304, %v804
        %v806 = vand.u32 %v805, 4294901760
        %807 = vmatpush1.msra.mxu0 %v806
        %808 = vmatprep.subr.mxu0 0.0
        %v809 = vand.u32 %v305, 4294901760
        %v810 = vsub.f32 %v305, %v809
        %v811 = vand.u32 %v810, 4294901760
        %812 = vmatpush1.msra.mxu0 %v811
        %813 = vmatprep.subr.mxu0 0.0
        %v814 = vand.u32 %v306, 4294901760
        %v815 = vsub.f32 %v306, %v814
        %v816 = vand.u32 %v815, 4294901760
        %817 = vmatpush1.msra.mxu0 %v816
        %818 = vmatprep.subr.mxu0 0.0
        %v819 = vand.u32 %v307, 4294901760
        %v820 = vsub.f32 %v307, %v819
        %v821 = vand.u32 %v820, 4294901760
        %822 = vmatpush1.msra.mxu0 %v821
        %823 = vmatprep.subr.mxu0 0.0
        %824 = vmatpush1.msra.mxu0 0.0
        %825 = vmatprep.subr.mxu0 0.0
        %826 = vmatpush1.msra.mxu0 0.0
        %827 = vmatprep.subr.mxu0 0.0
        %828 = vmatpush1.msra.mxu0 0.0
        %829 = vmatprep.subr.mxu0 0.0
        %830 = vmatpush1.msra.mxu0 0.0
        %831 = vmatprep.subr.mxu0 0.0
        %832 = vmatpush1.msra.mxu0 0.0
        %833 = vmatprep.subr.mxu0 0.0
        %834 = vmatpush1.msra.mxu0 0.0
        %835 = vmatprep.subr.mxu0 0.0
        %836 = vmatpush1.msra.mxu0 0.0
        %837 = vmatprep.subr.mxu0 0.0
        %838 = vmatpush1.msra.mxu0 0.0
        %839 = vmatprep.subr.mxu0 0.0
        %840 = vmatpush1.msra.mxu0 0.0
        %841 = vmatprep.subr.mxu0 0.0
        %842 = vmatpush1.msra.mxu0 0.0
        %843 = vmatprep.subr.mxu0 0.0
        %844 = vmatpush1.msra.mxu0 0.0
        %845 = vmatprep.subr.mxu0 0.0
        %846 = vmatpush1.msra.mxu0 0.0
        %847 = vmatprep.subr.mxu0 0.0
        %848 = vmatpush1.msra.mxu0 0.0
        %849 = vmatprep.subr.mxu0 0.0
        %850 = vmatpush1.msra.mxu0 0.0
        %851 = vmatprep.subr.mxu0 0.0
        %852 = vmatpush1.msra.mxu0 0.0
        %853 = vmatprep.subr.mxu0 0.0
        %854 = vmatpush1.msra.mxu0 0.0
        %855 = vmatprep.mubr.f32.mxu0 0.0
        %v856 = vand.u32 %v291, 4294901760
        %857 = vmatmul.mubr.f32.gmra.mrb[0].mxu0 %v856
        %v858 = vpop.f32.mrb[0].mxu0
        %v859 = vadd.f32 %v740, %v858
        %v860 = vpop.f32.mrb[0].mxu0
        %861 = vdwg.mxu0
        %862 = vmatprep.subr.mxu0 0.0
        %v863 = vand.u32 %v292, 4294901760
        %864 = vmatpush1.msra.mxu0 %v863
        %865 = vmatprep.subr.mxu0 0.0
        %v866 = vand.u32 %v293, 4294901760
        %867 = vmatpush1.msra.mxu0 %v866
        %868 = vmatprep.subr.mxu0 0.0
        %v869 = vand.u32 %v294, 4294901760
        %870 = vmatpush1.msra.mxu0 %v869
        %871 = vmatprep.subr.mxu0 0.0
        %v872 = vand.u32 %v295, 4294901760
        %873 = vmatpush1.msra.mxu0 %v872
        %874 = vmatprep.subr.mxu0 0.0
        %v875 = vand.u32 %v296, 4294901760
        %876 = vmatpush1.msra.mxu0 %v875
        %877 = vmatprep.subr.mxu0 0.0
        %v878 = vand.u32 %v297, 4294901760
        %879 = vmatpush1.msra.mxu0 %v878
        %880 = vmatprep.subr.mxu0 0.0
        %v881 = vand.u32 %v298, 4294901760
        %882 = vmatpush1.msra.mxu0 %v881
        %883 = vmatprep.subr.mxu0 0.0
        %v884 = vand.u32 %v299, 4294901760
        %885 = vmatpush1.msra.mxu0 %v884
        %886 = vmatprep.subr.mxu0 0.0
        %v887 = vand.u32 %v300, 4294901760
        %888 = vmatpush1.msra.mxu0 %v887
        %889 = vmatprep.subr.mxu0 0.0
        %v890 = vand.u32 %v301, 4294901760
        %891 = vmatpush1.msra.mxu0 %v890
        %892 = vmatprep.subr.mxu0 0.0
        %v893 = vand.u32 %v302, 4294901760
        %894 = vmatpush1.msra.mxu0 %v893
        %895 = vmatprep.subr.mxu0 0.0
        %v896 = vand.u32 %v303, 4294901760
        %897 = vmatpush1.msra.mxu0 %v896
        %898 = vmatprep.subr.mxu0 0.0
        %v899 = vand.u32 %v304, 4294901760
        %900 = vmatpush1.msra.mxu0 %v899
        %901 = vmatprep.subr.mxu0 0.0
        %v902 = vand.u32 %v305, 4294901760
        %903 = vmatpush1.msra.mxu0 %v902
        %904 = vmatprep.subr.mxu0 0.0
        %v905 = vand.u32 %v306, 4294901760
        %906 = vmatpush1.msra.mxu0 %v905
        %907 = vmatprep.subr.mxu0 0.0
        %v908 = vand.u32 %v307, 4294901760
        %909 = vmatpush1.msra.mxu0 %v908
        %910 = vmatprep.subr.mxu0 0.0
        %911 = vmatpush1.msra.mxu0 0.0
        %912 = vmatprep.subr.mxu0 0.0
        %913 = vmatpush1.msra.mxu0 0.0
        %914 = vmatprep.subr.mxu0 0.0
        %915 = vmatpush1.msra.mxu0 0.0
        %916 = vmatprep.subr.mxu0 0.0
        %917 = vmatpush1.msra.mxu0 0.0
        %918 = vmatprep.subr.mxu0 0.0
        %919 = vmatpush1.msra.mxu0 0.0
        %920 = vmatprep.subr.mxu0 0.0
        %921 = vmatpush1.msra.mxu0 0.0
        %922 = vmatprep.subr.mxu0 0.0
        %923 = vmatpush1.msra.mxu0 0.0
        %924 = vmatprep.subr.mxu0 0.0
        %925 = vmatpush1.msra.mxu0 0.0
        %926 = vmatprep.subr.mxu0 0.0
        %927 = vmatpush1.msra.mxu0 0.0
        %928 = vmatprep.subr.mxu0 0.0
        %929 = vmatpush1.msra.mxu0 0.0
        %930 = vmatprep.subr.mxu0 0.0
        %931 = vmatpush1.msra.mxu0 0.0
        %932 = vmatprep.subr.mxu0 0.0
        %933 = vmatpush1.msra.mxu0 0.0
        %934 = vmatprep.subr.mxu0 0.0
        %935 = vmatpush1.msra.mxu0 0.0
        %936 = vmatprep.subr.mxu0 0.0
        %937 = vmatpush1.msra.mxu0 0.0
        %938 = vmatprep.subr.mxu0 0.0
        %939 = vmatpush1.msra.mxu0 0.0
        %940 = vmatprep.subr.mxu0 0.0
        %941 = vmatpush1.msra.mxu0 0.0
        %942 = vmatprep.mubr.f32.mxu0 0.0
        %v943 = vand.u32 %v291, 4294901760
        %944 = vmatmul.mubr.f32.gmra.mrb[0].mxu0 %v943
        %v945 = vpop.f32.mrb[0].mxu0
        %v946 = vadd.f32 %v859, %v945
        %v947 = vpop.f32.mrb[0].mxu0
        %948 = vdwg.mxu0
        %v949 = vsub.f32 %v291, %v946
        %v950 = vmul.f32 %v949, %v949
        %951 = vmatprep.subr.mxu0 0.0
        %v952 = vand.u32 %v292, 4294901760
        %953 = vmatpush1.msra.mxu0 %v952
        %954 = vmatprep.subr.mxu0 0.0
        %v955 = vand.u32 %v293, 4294901760
        %956 = vmatpush1.msra.mxu0 %v955
        %957 = vmatprep.subr.mxu0 0.0
        %v958 = vand.u32 %v294, 4294901760
        %959 = vmatpush1.msra.mxu0 %v958
        %960 = vmatprep.subr.mxu0 0.0
        %v961 = vand.u32 %v295, 4294901760
        %962 = vmatpush1.msra.mxu0 %v961
        %963 = vmatprep.subr.mxu0 0.0
        %v964 = vand.u32 %v296, 4294901760
        %965 = vmatpush1.msra.mxu0 %v964
        %966 = vmatprep.subr.mxu0 0.0
        %v967 = vand.u32 %v297, 4294901760
        %968 = vmatpush1.msra.mxu0 %v967
        %969 = vmatprep.subr.mxu0 0.0
        %v970 = vand.u32 %v298, 4294901760
        %971 = vmatpush1.msra.mxu0 %v970
        %972 = vmatprep.subr.mxu0 0.0
        %v973 = vand.u32 %v299, 4294901760
        %974 = vmatpush1.msra.mxu0 %v973
        %975 = vmatprep.subr.mxu0 0.0
        %v976 = vand.u32 %v300, 4294901760
        %977 = vmatpush1.msra.mxu0 %v976
        %978 = vmatprep.subr.mxu0 0.0
        %v979 = vand.u32 %v301, 4294901760
        %980 = vmatpush1.msra.mxu0 %v979
        %981 = vmatprep.subr.mxu0 0.0
        %v982 = vand.u32 %v302, 4294901760
        %983 = vmatpush1.msra.mxu0 %v982
        %984 = vmatprep.subr.mxu0 0.0
        %v985 = vand.u32 %v303, 4294901760
        %986 = vmatpush1.msra.mxu0 %v985
        %987 = vmatprep.subr.mxu0 0.0
        %v988 = vand.u32 %v304, 4294901760
        %989 = vmatpush1.msra.mxu0 %v988
        %990 = vmatprep.subr.mxu0 0.0
        %v991 = vand.u32 %v305, 4294901760
        %992 = vmatpush1.msra.mxu0 %v991
        %993 = vmatprep.subr.mxu0 0.0
        %v994 = vand.u32 %v306, 4294901760
        %995 = vmatpush1.msra.mxu0 %v994
        %996 = vmatprep.subr.mxu0 0.0
        %v997 = vand.u32 %v307, 4294901760
        %998 = vmatpush1.msra.mxu0 %v997
        %999 = vmatprep.subr.mxu0 0.0
        %1000 = vmatpush1.msra.mxu0 0.0
        %1001 = vmatprep.subr.mxu0 0.0
        %1002 = vmatpush1.msra.mxu0 0.0
        %1003 = vmatprep.subr.mxu0 0.0
        %1004 = vmatpush1.msra.mxu0 0.0
        %1005 = vmatprep.subr.mxu0 0.0
        %1006 = vmatpush1.msra.mxu0 0.0
        %1007 = vmatprep.subr.mxu0 0.0
        %1008 = vmatpush1.msra.mxu0 0.0
        %1009 = vmatprep.subr.mxu0 0.0
        %1010 = vmatpush1.msra.mxu0 0.0
        %1011 = vmatprep.subr.mxu0 0.0
        %1012 = vmatpush1.msra.mxu0 0.0
        %1013 = vmatprep.subr.mxu0 0.0
        %1014 = vmatpush1.msra.mxu0 0.0
        %1015 = vmatprep.subr.mxu0 0.0
        %1016 = vmatpush1.msra.mxu0 0.0
        %1017 = vmatprep.subr.mxu0 0.0
        %1018 = vmatpush1.msra.mxu0 0.0
        %1019 = vmatprep.subr.mxu0 0.0
        %1020 = vmatpush1.msra.mxu0 0.0
        %1021 = vmatprep.subr.mxu0 0.0
        %1022 = vmatpush1.msra.mxu0 0.0
        %1023 = vmatprep.subr.mxu0 0.0
        %1024 = vmatpush1.msra.mxu0 0.0
        %1025 = vmatprep.subr.mxu0 0.0
        %1026 = vmatpush1.msra.mxu0 0.0
        %1027 = vmatprep.subr.mxu0 0.0
        %1028 = vmatpush1.msra.mxu0 0.0
        %1029 = vmatprep.subr.mxu0 0.0
        %1030 = vmatpush1.msra.mxu0 0.0
        %1031 = vmatprep.mubr.f32.mxu0 0.0
        %v1032 = vand.u32 %v950, 4294901760
        %v1033 = vsub.f32 %v950, %v1032
        %v1034 = vand.u32 %v1033, 4294901760
        %v1035 = vsub.f32 %v1033, %v1034
        %v1036 = vand.u32 %v1035, 4294901760
        %1037 = vmatmul.mubr.f32.gmra.mrb[0].mxu0 %v1036
        %v1038 = vpop.f32.mrb[0].mxu0
        %v1039 = vadd.f32 1e-12, %v1038
        %v1040 = vpop.f32.mrb[0].mxu0
        %1041 = vdwg.mxu0
        %1042 = vmatprep.subr.mxu0 0.0
        %v1043 = vand.u32 %v292, 4294901760
        %v1044 = vsub.f32 %v292, %v1043
        %v1045 = vand.u32 %v1044, 4294901760
        %v1046 = vsub.f32 %v1044, %v1045
        %v1047 = vand.u32 %v1046, 4294901760
        %1048 = vmatpush1.msra.mxu0 %v1047
        %1049 = vmatprep.subr.mxu0 0.0
        %v1050 = vand.u32 %v293, 4294901760
        %v1051 = vsub.f32 %v293, %v1050
        %v1052 = vand.u32 %v1051, 4294901760
        %v1053 = vsub.f32 %v1051, %v1052
        %v1054 = vand.u32 %v1053, 4294901760
        %1055 = vmatpush1.msra.mxu0 %v1054
        %1056 = vmatprep.subr.mxu0 0.0
        %v1057 = vand.u32 %v294, 4294901760
        %v1058 = vsub.f32 %v294, %v1057
        %v1059 = vand.u32 %v1058, 4294901760
        %v1060 = vsub.f32 %v1058, %v1059
        %v1061 = vand.u32 %v1060, 4294901760
        %1062 = vmatpush1.msra.mxu0 %v1061
        %1063 = vmatprep.subr.mxu0 0.0
        %v1064 = vand.u32 %v295, 4294901760
        %v1065 = vsub.f32 %v295, %v1064
        %v1066 = vand.u32 %v1065, 4294901760
        %v1067 = vsub.f32 %v1065, %v1066
        %v1068 = vand.u32 %v1067, 4294901760
        %1069 = vmatpush1.msra.mxu0 %v1068
        %1070 = vmatprep.subr.mxu0 0.0
        %v1071 = vand.u32 %v296, 4294901760
        %v1072 = vsub.f32 %v296, %v1071
        %v1073 = vand.u32 %v1072, 4294901760
        %v1074 = vsub.f32 %v1072, %v1073
        %v1075 = vand.u32 %v1074, 4294901760
        %1076 = vmatpush1.msra.mxu0 %v1075
        %1077 = vmatprep.subr.mxu0 0.0
        %v1078 = vand.u32 %v297, 4294901760
        %v1079 = vsub.f32 %v297, %v1078
        %v1080 = vand.u32 %v1079, 4294901760
        %v1081 = vsub.f32 %v1079, %v1080
        %v1082 = vand.u32 %v1081, 4294901760
        %1083 = vmatpush1.msra.mxu0 %v1082
        %1084 = vmatprep.subr.mxu0 0.0
        %v1085 = vand.u32 %v298, 4294901760
        %v1086 = vsub.f32 %v298, %v1085
        %v1087 = vand.u32 %v1086, 4294901760
        %v1088 = vsub.f32 %v1086, %v1087
        %v1089 = vand.u32 %v1088, 4294901760
        %1090 = vmatpush1.msra.mxu0 %v1089
        %1091 = vmatprep.subr.mxu0 0.0
        %v1092 = vand.u32 %v299, 4294901760
        %v1093 = vsub.f32 %v299, %v1092
        %v1094 = vand.u32 %v1093, 4294901760
        %v1095 = vsub.f32 %v1093, %v1094
        %v1096 = vand.u32 %v1095, 4294901760
        %1097 = vmatpush1.msra.mxu0 %v1096
        %1098 = vmatprep.subr.mxu0 0.0
        %v1099 = vand.u32 %v300, 4294901760
        %v1100 = vsub.f32 %v300, %v1099
        %v1101 = vand.u32 %v1100, 4294901760
        %v1102 = vsub.f32 %v1100, %v1101
        %v1103 = vand.u32 %v1102, 4294901760
        %1104 = vmatpush1.msra.mxu0 %v1103
        %1105 = vmatprep.subr.mxu0 0.0
        %v1106 = vand.u32 %v301, 4294901760
        %v1107 = vsub.f32 %v301, %v1106
        %v1108 = vand.u32 %v1107, 4294901760
        %v1109 = vsub.f32 %v1107, %v1108
        %v1110 = vand.u32 %v1109, 4294901760
        %1111 = vmatpush1.msra.mxu0 %v1110
        %1112 = vmatprep.subr.mxu0 0.0
        %v1113 = vand.u32 %v302, 4294901760
        %v1114 = vsub.f32 %v302, %v1113
        %v1115 = vand.u32 %v1114, 4294901760
        %v1116 = vsub.f32 %v1114, %v1115
        %v1117 = vand.u32 %v1116, 4294901760
        %1118 = vmatpush1.msra.mxu0 %v1117
        %1119 = vmatprep.subr.mxu0 0.0
        %v1120 = vand.u32 %v303, 4294901760
        %v1121 = vsub.f32 %v303, %v1120
        %v1122 = vand.u32 %v1121, 4294901760
        %v1123 = vsub.f32 %v1121, %v1122
        %v1124 = vand.u32 %v1123, 4294901760
        %1125 = vmatpush1.msra.mxu0 %v1124
        %1126 = vmatprep.subr.mxu0 0.0
        %v1127 = vand.u32 %v304, 4294901760
        %v1128 = vsub.f32 %v304, %v1127
        %v1129 = vand.u32 %v1128, 4294901760
        %v1130 = vsub.f32 %v1128, %v1129
        %v1131 = vand.u32 %v1130, 4294901760
        %1132 = vmatpush1.msra.mxu0 %v1131
        %1133 = vmatprep.subr.mxu0 0.0
        %v1134 = vand.u32 %v305, 4294901760
        %v1135 = vsub.f32 %v305, %v1134
        %v1136 = vand.u32 %v1135, 4294901760
        %v1137 = vsub.f32 %v1135, %v1136
        %v1138 = vand.u32 %v1137, 4294901760
        %1139 = vmatpush1.msra.mxu0 %v1138
        %1140 = vmatprep.subr.mxu0 0.0
        %v1141 = vand.u32 %v306, 4294901760
        %v1142 = vsub.f32 %v306, %v1141
        %v1143 = vand.u32 %v1142, 4294901760
        %v1144 = vsub.f32 %v1142, %v1143
        %v1145 = vand.u32 %v1144, 4294901760
        %1146 = vmatpush1.msra.mxu0 %v1145
        %1147 = vmatprep.subr.mxu0 0.0
        %v1148 = vand.u32 %v307, 4294901760
        %v1149 = vsub.f32 %v307, %v1148
        %v1150 = vand.u32 %v1149, 4294901760
        %v1151 = vsub.f32 %v1149, %v1150
        %v1152 = vand.u32 %v1151, 4294901760
        %1153 = vmatpush1.msra.mxu0 %v1152
        %1154 = vmatprep.subr.mxu0 0.0
        %1155 = vmatpush1.msra.mxu0 0.0
        %1156 = vmatprep.subr.mxu0 0.0
        %1157 = vmatpush1.msra.mxu0 0.0
        %1158 = vmatprep.subr.mxu0 0.0
        %1159 = vmatpush1.msra.mxu0 0.0
        %1160 = vmatprep.subr.mxu0 0.0
        %1161 = vmatpush1.msra.mxu0 0.0
        %1162 = vmatprep.subr.mxu0 0.0
        %1163 = vmatpush1.msra.mxu0 0.0
        %1164 = vmatprep.subr.mxu0 0.0
        %1165 = vmatpush1.msra.mxu0 0.0
        %1166 = vmatprep.subr.mxu0 0.0
        %1167 = vmatpush1.msra.mxu0 0.0
        %1168 = vmatprep.subr.mxu0 0.0
        %1169 = vmatpush1.msra.mxu0 0.0
        %1170 = vmatprep.subr.mxu0 0.0
        %1171 = vmatpush1.msra.mxu0 0.0
        %1172 = vmatprep.subr.mxu0 0.0
        %1173 = vmatpush1.msra.mxu0 0.0
        %1174 = vmatprep.subr.mxu0 0.0
        %1175 = vmatpush1.msra.mxu0 0.0
        %1176 = vmatprep.subr.mxu0 0.0
        %1177 = vmatpush1.msra.mxu0 0.0
        %1178 = vmatprep.subr.mxu0 0.0
        %1179 = vmatpush1.msra.mxu0 0.0
        %1180 = vmatprep.subr.mxu0 0.0
        %1181 = vmatpush1.msra.mxu0 0.0
        %1182 = vmatprep.subr.mxu0 0.0
        %1183 = vmatpush1.msra.mxu0 0.0
        %1184 = vmatprep.subr.mxu0 0.0
        %1185 = vmatpush1.msra.mxu0 0.0
        %1186 = vmatprep.mubr.f32.mxu0 0.0
        %v1187 = vand.u32 %v950, 4294901760
        %1188 = vmatmul.mubr.f32.gmra.mrb[0].mxu0 %v1187
        %v1189 = vpop.f32.mrb[0].mxu0
        %v1190 = vadd.f32 %v1039, %v1189
        %v1191 = vpop.f32.mrb[0].mxu0
        %1192 = vdwg.mxu0
        %1193 = vmatprep.subr.mxu0 0.0
        %v1194 = vand.u32 %v292, 4294901760
        %v1195 = vsub.f32 %v292, %v1194
        %1196 = vmatpush1.msra.mxu0 %v1195
        %1197 = vmatprep.subr.mxu0 0.0
        %v1198 = vand.u32 %v293, 4294901760
        %v1199 = vsub.f32 %v293, %v1198
        %1200 = vmatpush1.msra.mxu0 %v1199
        %1201 = vmatprep.subr.mxu0 0.0
        %v1202 = vand.u32 %v294, 4294901760
        %v1203 = vsub.f32 %v294, %v1202
        %1204 = vmatpush1.msra.mxu0 %v1203
        %1205 = vmatprep.subr.mxu0 0.0
        %v1206 = vand.u32 %v295, 4294901760
        %v1207 = vsub.f32 %v295, %v1206
        %1208 = vmatpush1.msra.mxu0 %v1207
        %1209 = vmatprep.subr.mxu0 0.0
        %v1210 = vand.u32 %v296, 4294901760
        %v1211 = vsub.f32 %v296, %v1210
        %1212 = vmatpush1.msra.mxu0 %v1211
        %1213 = vmatprep.subr.mxu0 0.0
        %v1214 = vand.u32 %v297, 4294901760
        %v1215 = vsub.f32 %v297, %v1214
        %1216 = vmatpush1.msra.mxu0 %v1215
        %1217 = vmatprep.subr.mxu0 0.0
        %v1218 = vand.u32 %v298, 4294901760
        %v1219 = vsub.f32 %v298, %v1218
        %1220 = vmatpush1.msra.mxu0 %v1219
        %1221 = vmatprep.subr.mxu0 0.0
        %v1222 = vand.u32 %v299, 4294901760
        %v1223 = vsub.f32 %v299, %v1222
        %1224 = vmatpush1.msra.mxu0 %v1223
        %1225 = vmatprep.subr.mxu0 0.0
        %v1226 = vand.u32 %v300, 4294901760
        %v1227 = vsub.f32 %v300, %v1226
        %1228 = vmatpush1.msra.mxu0 %v1227
        %1229 = vmatprep.subr.mxu0 0.0
        %v1230 = vand.u32 %v301, 4294901760
        %v1231 = vsub.f32 %v301, %v1230
        %1232 = vmatpush1.msra.mxu0 %v1231
        %1233 = vmatprep.subr.mxu0 0.0
        %v1234 = vand.u32 %v302, 4294901760
        %v1235 = vsub.f32 %v302, %v1234
        %1236 = vmatpush1.msra.mxu0 %v1235
        %1237 = vmatprep.subr.mxu0 0.0
        %v1238 = vand.u32 %v303, 4294901760
        %v1239 = vsub.f32 %v303, %v1238
        %1240 = vmatpush1.msra.mxu0 %v1239
        %1241 = vmatprep.subr.mxu0 0.0
        %v1242 = vand.u32 %v304, 4294901760
        %v1243 = vsub.f32 %v304, %v1242
        %1244 = vmatpush1.msra.mxu0 %v1243
        %1245 = vmatprep.subr.mxu0 0.0
        %v1246 = vand.u32 %v305, 4294901760
        %v1247 = vsub.f32 %v305, %v1246
        %1248 = vmatpush1.msra.mxu0 %v1247
        %1249 = vmatprep.subr.mxu0 0.0
        %v1250 = vand.u32 %v306, 4294901760
        %v1251 = vsub.f32 %v306, %v1250
        %1252 = vmatpush1.msra.mxu0 %v1251
        %1253 = vmatprep.subr.mxu0 0.0
        %v1254 = vand.u32 %v307, 4294901760
        %v1255 = vsub.f32 %v307, %v1254
        %1256 = vmatpush1.msra.mxu0 %v1255
        %1257 = vmatprep.subr.mxu0 0.0
        %1258 = vmatpush1.msra.mxu0 0.0
        %1259 = vmatprep.subr.mxu0 0.0
        %1260 = vmatpush1.msra.mxu0 0.0
        %1261 = vmatprep.subr.mxu0 0.0
        %1262 = vmatpush1.msra.mxu0 0.0
        %1263 = vmatprep.subr.mxu0 0.0
        %1264 = vmatpush1.msra.mxu0 0.0
        %1265 = vmatprep.subr.mxu0 0.0
        %1266 = vmatpush1.msra.mxu0 0.0
        %1267 = vmatprep.subr.mxu0 0.0
        %1268 = vmatpush1.msra.mxu0 0.0
        %1269 = vmatprep.subr.mxu0 0.0
        %1270 = vmatpush1.msra.mxu0 0.0
        %1271 = vmatprep.subr.mxu0 0.0
        %1272 = vmatpush1.msra.mxu0 0.0
        %1273 = vmatprep.subr.mxu0 0.0
        %1274 = vmatpush1.msra.mxu0 0.0
        %1275 = vmatprep.subr.mxu0 0.0
        %1276 = vmatpush1.msra.mxu0 0.0
        %1277 = vmatprep.subr.mxu0 0.0
        %1278 = vmatpush1.msra.mxu0 0.0
        %1279 = vmatprep.subr.mxu0 0.0
        %1280 = vmatpush1.msra.mxu0 0.0
        %1281 = vmatprep.subr.mxu0 0.0
        %1282 = vmatpush1.msra.mxu0 0.0
        %1283 = vmatprep.subr.mxu0 0.0
        %1284 = vmatpush1.msra.mxu0 0.0
        %1285 = vmatprep.subr.mxu0 0.0
        %1286 = vmatpush1.msra.mxu0 0.0
        %1287 = vmatprep.subr.mxu0 0.0
        %1288 = vmatpush1.msra.mxu0 0.0
        %1289 = vmatprep.mubr.f32.mxu0 0.0
        %v1290 = vand.u32 %v950, 4294901760
        %v1291 = vsub.f32 %v950, %v1290
        %1292 = vmatmul.mubr.f32.gmra.mrb[0].mxu0 %v1291
        %v1293 = vpop.f32.mrb[0].mxu0
        %v1294 = vadd.f32 %v1190, %v1293
        %v1295 = vpop.f32.mrb[0].mxu0
        %1296 = vdwg.mxu0
        %1297 = vmatprep.subr.mxu0 0.0
        %v1298 = vand.u32 %v292, 4294901760
        %1299 = vmatpush1.msra.mxu0 %v1298
        %1300 = vmatprep.subr.mxu0 0.0
        %v1301 = vand.u32 %v293, 4294901760
        %1302 = vmatpush1.msra.mxu0 %v1301
        %1303 = vmatprep.subr.mxu0 0.0
        %v1304 = vand.u32 %v294, 4294901760
        %1305 = vmatpush1.msra.mxu0 %v1304
        %1306 = vmatprep.subr.mxu0 0.0
        %v1307 = vand.u32 %v295, 4294901760
        %1308 = vmatpush1.msra.mxu0 %v1307
        %1309 = vmatprep.subr.mxu0 0.0
        %v1310 = vand.u32 %v296, 4294901760
        %1311 = vmatpush1.msra.mxu0 %v1310
        %1312 = vmatprep.subr.mxu0 0.0
        %v1313 = vand.u32 %v297, 4294901760
        %1314 = vmatpush1.msra.mxu0 %v1313
        %1315 = vmatprep.subr.mxu0 0.0
        %v1316 = vand.u32 %v298, 4294901760
        %1317 = vmatpush1.msra.mxu0 %v1316
        %1318 = vmatprep.subr.mxu0 0.0
        %v1319 = vand.u32 %v299, 4294901760
        %1320 = vmatpush1.msra.mxu0 %v1319
        %1321 = vmatprep.subr.mxu0 0.0
        %v1322 = vand.u32 %v300, 4294901760
        %1323 = vmatpush1.msra.mxu0 %v1322
        %1324 = vmatprep.subr.mxu0 0.0
        %v1325 = vand.u32 %v301, 4294901760
        %1326 = vmatpush1.msra.mxu0 %v1325
        %1327 = vmatprep.subr.mxu0 0.0
        %v1328 = vand.u32 %v302, 4294901760
        %1329 = vmatpush1.msra.mxu0 %v1328
        %1330 = vmatprep.subr.mxu0 0.0
        %v1331 = vand.u32 %v303, 4294901760
        %1332 = vmatpush1.msra.mxu0 %v1331
        %1333 = vmatprep.subr.mxu0 0.0
        %v1334 = vand.u32 %v304, 4294901760
        %1335 = vmatpush1.msra.mxu0 %v1334
        %1336 = vmatprep.subr.mxu0 0.0
        %v1337 = vand.u32 %v305, 4294901760
        %1338 = vmatpush1.msra.mxu0 %v1337
        %1339 = vmatprep.subr.mxu0 0.0
        %v1340 = vand.u32 %v306, 4294901760
        %1341 = vmatpush1.msra.mxu0 %v1340
        %1342 = vmatprep.subr.mxu0 0.0
        %v1343 = vand.u32 %v307, 4294901760
        %1344 = vmatpush1.msra.mxu0 %v1343
        %1345 = vmatprep.subr.mxu0 0.0
        %1346 = vmatpush1.msra.mxu0 0.0
        %1347 = vmatprep.subr.mxu0 0.0
        %1348 = vmatpush1.msra.mxu0 0.0
        %1349 = vmatprep.subr.mxu0 0.0
        %1350 = vmatpush1.msra.mxu0 0.0
        %1351 = vmatprep.subr.mxu0 0.0
        %1352 = vmatpush1.msra.mxu0 0.0
        %1353 = vmatprep.subr.mxu0 0.0
        %1354 = vmatpush1.msra.mxu0 0.0
        %1355 = vmatprep.subr.mxu0 0.0
        %1356 = vmatpush1.msra.mxu0 0.0
        %1357 = vmatprep.subr.mxu0 0.0
        %1358 = vmatpush1.msra.mxu0 0.0
        %1359 = vmatprep.subr.mxu0 0.0
        %1360 = vmatpush1.msra.mxu0 0.0
        %1361 = vmatprep.subr.mxu0 0.0
        %1362 = vmatpush1.msra.mxu0 0.0
        %1363 = vmatprep.subr.mxu0 0.0
        %1364 = vmatpush1.msra.mxu0 0.0
        %1365 = vmatprep.subr.mxu0 0.0
        %1366 = vmatpush1.msra.mxu0 0.0
        %1367 = vmatprep.subr.mxu0 0.0
        %1368 = vmatpush1.msra.mxu0 0.0
        %1369 = vmatprep.subr.mxu0 0.0
        %1370 = vmatpush1.msra.mxu0 0.0
        %1371 = vmatprep.subr.mxu0 0.0
        %1372 = vmatpush1.msra.mxu0 0.0
        %1373 = vmatprep.subr.mxu0 0.0
        %1374 = vmatpush1.msra.mxu0 0.0
        %1375 = vmatprep.subr.mxu0 0.0
        %1376 = vmatpush1.msra.mxu0 0.0
        %1377 = vmatprep.mubr.f32.mxu0 0.0
        %v1378 = vand.u32 %v950, 4294901760
        %v1379 = vsub.f32 %v950, %v1378
        %v1380 = vand.u32 %v1379, 4294901760
        %1381 = vmatmul.mubr.f32.gmra.mrb[0].mxu0 %v1380
        %v1382 = vpop.f32.mrb[0].mxu0
        %v1383 = vadd.f32 %v1294, %v1382
        %v1384 = vpop.f32.mrb[0].mxu0
        %1385 = vdwg.mxu0
        %1386 = vmatprep.subr.mxu0 0.0
        %v1387 = vand.u32 %v292, 4294901760
        %v1388 = vsub.f32 %v292, %v1387
        %v1389 = vand.u32 %v1388, 4294901760
        %1390 = vmatpush1.msra.mxu0 %v1389
        %1391 = vmatprep.subr.mxu0 0.0
        %v1392 = vand.u32 %v293, 4294901760
        %v1393 = vsub.f32 %v293, %v1392
        %v1394 = vand.u32 %v1393, 4294901760
        %1395 = vmatpush1.msra.mxu0 %v1394
        %1396 = vmatprep.subr.mxu0 0.0
        %v1397 = vand.u32 %v294, 4294901760
        %v1398 = vsub.f32 %v294, %v1397
        %v1399 = vand.u32 %v1398, 4294901760
        %1400 = vmatpush1.msra.mxu0 %v1399
        %1401 = vmatprep.subr.mxu0 0.0
        %v1402 = vand.u32 %v295, 4294901760
        %v1403 = vsub.f32 %v295, %v1402
        %v1404 = vand.u32 %v1403, 4294901760
        %1405 = vmatpush1.msra.mxu0 %v1404
        %1406 = vmatprep.subr.mxu0 0.0
        %v1407 = vand.u32 %v296, 4294901760
        %v1408 = vsub.f32 %v296, %v1407
        %v1409 = vand.u32 %v1408, 4294901760
        %1410 = vmatpush1.msra.mxu0 %v1409
        %1411 = vmatprep.subr.mxu0 0.0
        %v1412 = vand.u32 %v297, 4294901760
        %v1413 = vsub.f32 %v297, %v1412
        %v1414 = vand.u32 %v1413, 4294901760
        %1415 = vmatpush1.msra.mxu0 %v1414
        %1416 = vmatprep.subr.mxu0 0.0
        %v1417 = vand.u32 %v298, 4294901760
        %v1418 = vsub.f32 %v298, %v1417
        %v1419 = vand.u32 %v1418, 4294901760
        %1420 = vmatpush1.msra.mxu0 %v1419
        %1421 = vmatprep.subr.mxu0 0.0
        %v1422 = vand.u32 %v299, 4294901760
        %v1423 = vsub.f32 %v299, %v1422
        %v1424 = vand.u32 %v1423, 4294901760
        %1425 = vmatpush1.msra.mxu0 %v1424
        %1426 = vmatprep.subr.mxu0 0.0
        %v1427 = vand.u32 %v300, 4294901760
        %v1428 = vsub.f32 %v300, %v1427
        %v1429 = vand.u32 %v1428, 4294901760
        %1430 = vmatpush1.msra.mxu0 %v1429
        %1431 = vmatprep.subr.mxu0 0.0
        %v1432 = vand.u32 %v301, 4294901760
        %v1433 = vsub.f32 %v301, %v1432
        %v1434 = vand.u32 %v1433, 4294901760
        %1435 = vmatpush1.msra.mxu0 %v1434
        %1436 = vmatprep.subr.mxu0 0.0
        %v1437 = vand.u32 %v302, 4294901760
        %v1438 = vsub.f32 %v302, %v1437
        %v1439 = vand.u32 %v1438, 4294901760
        %1440 = vmatpush1.msra.mxu0 %v1439
        %1441 = vmatprep.subr.mxu0 0.0
        %v1442 = vand.u32 %v303, 4294901760
        %v1443 = vsub.f32 %v303, %v1442
        %v1444 = vand.u32 %v1443, 4294901760
        %1445 = vmatpush1.msra.mxu0 %v1444
        %1446 = vmatprep.subr.mxu0 0.0
        %v1447 = vand.u32 %v304, 4294901760
        %v1448 = vsub.f32 %v304, %v1447
        %v1449 = vand.u32 %v1448, 4294901760
        %1450 = vmatpush1.msra.mxu0 %v1449
        %1451 = vmatprep.subr.mxu0 0.0
        %v1452 = vand.u32 %v305, 4294901760
        %v1453 = vsub.f32 %v305, %v1452
        %v1454 = vand.u32 %v1453, 4294901760
        %1455 = vmatpush1.msra.mxu0 %v1454
        %1456 = vmatprep.subr.mxu0 0.0
        %v1457 = vand.u32 %v306, 4294901760
        %v1458 = vsub.f32 %v306, %v1457
        %v1459 = vand.u32 %v1458, 4294901760
        %1460 = vmatpush1.msra.mxu0 %v1459
        %1461 = vmatprep.subr.mxu0 0.0
        %v1462 = vand.u32 %v307, 4294901760
        %v1463 = vsub.f32 %v307, %v1462
        %v1464 = vand.u32 %v1463, 4294901760
        %1465 = vmatpush1.msra.mxu0 %v1464
        %1466 = vmatprep.subr.mxu0 0.0
        %1467 = vmatpush1.msra.mxu0 0.0
        %1468 = vmatprep.subr.mxu0 0.0
        %1469 = vmatpush1.msra.mxu0 0.0
        %1470 = vmatprep.subr.mxu0 0.0
        %1471 = vmatpush1.msra.mxu0 0.0
        %1472 = vmatprep.subr.mxu0 0.0
        %1473 = vmatpush1.msra.mxu0 0.0
        %1474 = vmatprep.subr.mxu0 0.0
        %1475 = vmatpush1.msra.mxu0 0.0
        %1476 = vmatprep.subr.mxu0 0.0
        %1477 = vmatpush1.msra.mxu0 0.0
        %1478 = vmatprep.subr.mxu0 0.0
        %1479 = vmatpush1.msra.mxu0 0.0
        %1480 = vmatprep.subr.mxu0 0.0
        %1481 = vmatpush1.msra.mxu0 0.0
        %1482 = vmatprep.subr.mxu0 0.0
        %1483 = vmatpush1.msra.mxu0 0.0
        %1484 = vmatprep.subr.mxu0 0.0
        %1485 = vmatpush1.msra.mxu0 0.0
        %1486 = vmatprep.subr.mxu0 0.0
        %1487 = vmatpush1.msra.mxu0 0.0
        %1488 = vmatprep.subr.mxu0 0.0
        %1489 = vmatpush1.msra.mxu0 0.0
        %1490 = vmatprep.subr.mxu0 0.0
        %1491 = vmatpush1.msra.mxu0 0.0
        %1492 = vmatprep.subr.mxu0 0.0
        %1493 = vmatpush1.msra.mxu0 0.0
        %1494 = vmatprep.subr.mxu0 0.0
        %1495 = vmatpush1.msra.mxu0 0.0
        %1496 = vmatprep.subr.mxu0 0.0
        %1497 = vmatpush1.msra.mxu0 0.0
        %1498 = vmatprep.mubr.f32.mxu0 0.0
        %v1499 = vand.u32 %v950, 4294901760
        %1500 = vmatmul.mubr.f32.gmra.mrb[0].mxu0 %v1499
        %v1501 = vpop.f32.mrb[0].mxu0
        %v1502 = vadd.f32 %v1383, %v1501
        %v1503 = vpop.f32.mrb[0].mxu0
        %1504 = vdwg.mxu0
        %1505 = vmatprep.subr.mxu0 0.0
        %v1506 = vand.u32 %v292, 4294901760
        %1507 = vmatpush1.msra.mxu0 %v1506
        %1508 = vmatprep.subr.mxu0 0.0
        %v1509 = vand.u32 %v293, 4294901760
        %1510 = vmatpush1.msra.mxu0 %v1509
        %1511 = vmatprep.subr.mxu0 0.0
        %v1512 = vand.u32 %v294, 4294901760
        %1513 = vmatpush1.msra.mxu0 %v1512
        %1514 = vmatprep.subr.mxu0 0.0
        %v1515 = vand.u32 %v295, 4294901760
        %1516 = vmatpush1.msra.mxu0 %v1515
        %1517 = vmatprep.subr.mxu0 0.0
        %v1518 = vand.u32 %v296, 4294901760
        %1519 = vmatpush1.msra.mxu0 %v1518
        %1520 = vmatprep.subr.mxu0 0.0
        %v1521 = vand.u32 %v297, 4294901760
        %1522 = vmatpush1.msra.mxu0 %v1521
        %1523 = vmatprep.subr.mxu0 0.0
        %v1524 = vand.u32 %v298, 4294901760
        %1525 = vmatpush1.msra.mxu0 %v1524
        %1526 = vmatprep.subr.mxu0 0.0
        %v1527 = vand.u32 %v299, 4294901760
        %1528 = vmatpush1.msra.mxu0 %v1527
        %1529 = vmatprep.subr.mxu0 0.0
        %v1530 = vand.u32 %v300, 4294901760
        %1531 = vmatpush1.msra.mxu0 %v1530
        %1532 = vmatprep.subr.mxu0 0.0
        %v1533 = vand.u32 %v301, 4294901760
        %1534 = vmatpush1.msra.mxu0 %v1533
        %1535 = vmatprep.subr.mxu0 0.0
        %v1536 = vand.u32 %v302, 4294901760
        %1537 = vmatpush1.msra.mxu0 %v1536
        %1538 = vmatprep.subr.mxu0 0.0
        %v1539 = vand.u32 %v303, 4294901760
        %1540 = vmatpush1.msra.mxu0 %v1539
        %1541 = vmatprep.subr.mxu0 0.0
        %v1542 = vand.u32 %v304, 4294901760
        %1543 = vmatpush1.msra.mxu0 %v1542
        %1544 = vmatprep.subr.mxu0 0.0
        %v1545 = vand.u32 %v305, 4294901760
        %1546 = vmatpush1.msra.mxu0 %v1545
        %1547 = vmatprep.subr.mxu0 0.0
        %v1548 = vand.u32 %v306, 4294901760
        %1549 = vmatpush1.msra.mxu0 %v1548
        %1550 = vmatprep.subr.mxu0 0.0
        %v1551 = vand.u32 %v307, 4294901760
        %1552 = vmatpush1.msra.mxu0 %v1551
        %1553 = vmatprep.subr.mxu0 0.0
        %1554 = vmatpush1.msra.mxu0 0.0
        %1555 = vmatprep.subr.mxu0 0.0
        %1556 = vmatpush1.msra.mxu0 0.0
        %1557 = vmatprep.subr.mxu0 0.0
        %1558 = vmatpush1.msra.mxu0 0.0
        %1559 = vmatprep.subr.mxu0 0.0
        %1560 = vmatpush1.msra.mxu0 0.0
        %1561 = vmatprep.subr.mxu0 0.0
        %1562 = vmatpush1.msra.mxu0 0.0
        %1563 = vmatprep.subr.mxu0 0.0
        %1564 = vmatpush1.msra.mxu0 0.0
        %1565 = vmatprep.subr.mxu0 0.0
        %1566 = vmatpush1.msra.mxu0 0.0
        %1567 = vmatprep.subr.mxu0 0.0
        %1568 = vmatpush1.msra.mxu0 0.0
        %1569 = vmatprep.subr.mxu0 0.0
        %1570 = vmatpush1.msra.mxu0 0.0
        %1571 = vmatprep.subr.mxu0 0.0
        %1572 = vmatpush1.msra.mxu0 0.0
        %1573 = vmatprep.subr.mxu0 0.0
        %1574 = vmatpush1.msra.mxu0 0.0
        %1575 = vmatprep.subr.mxu0 0.0
        %1576 = vmatpush1.msra.mxu0 0.0
        %1577 = vmatprep.subr.mxu0 0.0
        %1578 = vmatpush1.msra.mxu0 0.0
        %1579 = vmatprep.subr.mxu0 0.0
        %1580 = vmatpush1.msra.mxu0 0.0
        %1581 = vmatprep.subr.mxu0 0.0
        %1582 = vmatpush1.msra.mxu0 0.0
        %1583 = vmatprep.subr.mxu0 0.0
        %1584 = vmatpush1.msra.mxu0 0.0
        %1585 = vmatprep.mubr.f32.mxu0 0.0
        %v1586 = vand.u32 %v950, 4294901760
        %1587 = vmatmul.mubr.f32.gmra.mrb[0].mxu0 %v1586
        %v1588 = vpop.f32.mrb[0].mxu0
        %v1589 = vadd.f32 %v1502, %v1588
        %v1590 = vpop.f32.mrb[0].mxu0
        %1591 = vdwg.mxu0
        %v1592 = vrsqrt.pop %v1589
        %v1593 = vmul.f32 %v949, %v1592
        %v1594 = vld [vmem:[%s3] sm:$0x1]
        %v1596 = vlaneseq
        %v1597 = vshrl.u32 %v1596, 7
        %v1598 = vsub.s32 0, %v1597
        %v1599 = vrot.slane %v1594, %v1598
        %v1601 = vmul.f32 %v1593, %v1599
        %v1602 = vld [vmem:[%s4] sm:$0x1]
        %v1604 = vlaneseq
        %v1605 = vshrl.u32 %v1604, 7
        %v1606 = vsub.s32 0, %v1605
        %v1607 = vrot.slane %v1602, %v1606
        %v1609 = vadd.f32 %v1601, %v1607
        %1610 = vst [vmem:[%s284] sm:$0x3] %v1609
        %s1611 = sand.u32 %s162, 1
        %s1612 = scalar_lea.sflag [#allocation4], %s1611
        %s1613 = sand.u32 %s162, 1
        %s1614 = smul.addr %s1613, 2
        %s1615 = scalar_lea.vmem [#allocation7], %s1614
        // Predicated region
        $region49: #{tpu_custom_call.1} parent=39 // pred_check
          %p1616 = pneg %p172
        $region50: #{tpu_custom_call.1} parent=39 // pred_check_branch
          %1618 = sbr.rel (%p1616) target = $region52
        $region51: #{tpu_custom_call.1} parent=39 // pred_region
          %s1620 = ssub.s32 32, 32
          %1621 = vsyncadd %s1612, %s1620
          %s1622 = sadd.s32 %s27, %s28
          %s1623 = smul.addr %s1622, 32
          %s1624 = scalar_lea.hbm %s5, %s1623
          %s1626 = sshll.u32 %s1615, 4
          %s1627 = int_to_ptr.vmem [resolvable:$true] %s1626
          %1629 = dma.vmem_to_hbm [thread:$0]  %s1627, 32, %s1624, %s1612
        $region52: #{tpu_custom_call.1} parent=39 // pred_fallthru
          _
      $region40: #{tpu_custom_call.1} parent=5 // pred_fallthru
        _
      %p1630 = scmp.le.s32.totalorder 2, %s18
      // Predicated region
      $region53: #{tpu_custom_call.1} parent=5 // pred_check
        %p1631 = pneg %p1630
      $region54: #{tpu_custom_call.1} parent=5 // pred_check_branch
        %1633 = sbr.rel (%p1631) target = $region56
      $region55: #{tpu_custom_call.1} parent=5 // pred_region
        %s1634 = ssub.s32 %s18, 2
        // Predicated region
        $region57: #{tpu_custom_call.1} parent=55 // pred_check
          %p1635 = pneg %p178
        $region58: #{tpu_custom_call.1} parent=55 // pred_check_branch
          %1637 = sbr.rel (%p1635) target = $region60
        $region59: #{tpu_custom_call.1} parent=55 // pred_region
          %s1638 = sand.u32 %s163, 1
          %s1639 = scalar_lea.sflag [#allocation4], %s1638
          %s1640 = sand.u32 %s163, 1
          %s1641 = smul.addr %s1640, 2
          %s1642 = scalar_lea.vmem [#allocation7], %s1641
          %1643 = dma.done %s1639, 32
        $region60: #{tpu_custom_call.1} parent=55 // pred_fallthru
          _
      $region56: #{tpu_custom_call.1} parent=5 // pred_fallthru
        _
    $region6: #{tpu_custom_call.1} parent=1 // loop_footer
      %s22 = sadd.s32 1, %s18
    $region7: #{tpu_custom_call.1} parent=1 // loop_footer_branch
      %17 = sbr.rel target = $region3
    $region8: #{tpu_custom_call.1} parent=1 // loop_exit
      _
    %1644 = vsyncpa [#allocation3], 1
    %s1645 = scalar_lea.sflag [#allocation3], 1
    %1646 = vsyncpa %s1645, 1
    %1647 = vsyncpa [#allocation6], 1
    %1648 = vsyncpa [#allocation4], 1
    %s1649 = scalar_lea.sflag [#allocation4], 1
    %1650 = vsyncpa %s1649, 1

</llo_original>
